<compile_context>
chip_gen: v5e
topology: v5e:2x2
jax: 0.10.0
libtpu: 0.0.40
codegen_flags: <defaults>
</compile_context>

<pallas_src>
import functools

import jax
import jax.numpy as jnp
import numpy as np
from jax.experimental import pallas as pl
from jax.experimental.pallas import tpu as pltpu

NEG_SLOPE = 0.01   # nn.LeakyReLU() default negative slope
LANE = 128


def _leaky(v):
    return jnp.where(v >= 0, v, NEG_SLOPE * v)


def _shift_left(p, k):
    """out[:, t] = p[:, t + k]; zero fill on the right (no wrap)."""
    if k == 0:
        return p
    z = jnp.zeros((p.shape[0], k), p.dtype)
    return jnp.concatenate([p[:, k:], z], axis=1)


def _shift_right(p, k):
    """out[:, t] = p[:, t - k] for t >= k; zero fill on the left (no wrap)."""
    if k == 0:
        return p
    z = jnp.zeros((p.shape[0], k), p.dtype)
    return jnp.concatenate([z, p[:, :-k]], axis=1)


def _conv1d(planes, par_ref, w_off, b_off, c_in, c_out, ksize):
    """Valid Conv1d + LeakyReLU on per-channel (bn, l_pad) planes.

    PyTorch weight layout (c_out, c_in, k), flattened at par_ref[w_off:]; biases at
    par_ref[b_off:].  k is the outermost loop: each shifted tap is produced once and
    accumulated into every output channel, then discarded.
    """
    shape = planes[0].shape
    accs = [jnp.full(shape, par_ref[b_off + co], jnp.float32) for co in range(c_out)]
    for k in range(ksize):
        for ci in range(c_in):
            tap = _shift_left(planes[ci], k)
            for co in range(c_out):
                w = par_ref[w_off + (co * c_in + ci) * ksize + k]
                accs[co] = accs[co] + w * tap
    return [_leaky(a) for a in accs]


def _convt1d(planes, par_ref, w_off, b_off, c_in, c_out, ksize):
    """ConvTranspose1d (stride=1, padding=0) + LeakyReLU.

    PyTorch weight layout (c_in, c_out, k):
        out[:, co, t] = b[co] + sum_{ci,k} w[ci, co, k] * x[:, ci, t - k]
    Requires the input planes to be zero beyond their valid length (masked by caller).
    """
    shape = planes[0].shape
    accs = [jnp.full(shape, par_ref[b_off + co], jnp.float32) for co in range(c_out)]
    for k in range(ksize):
        for ci in range(c_in):
            tap = _shift_right(planes[ci], k)
            for co in range(c_out):
                w = par_ref[w_off + (ci * c_out + co) * ksize + k]
                accs[co] = accs[co] + w * tap
    return [_leaky(a) for a in accs]


def _autoencoder_kernel(x_ref, par_ref, out_ref, *, c_in, c_conv, l_in, offs):
    bn = x_ref.shape[0]
    l_pad = x_ref.shape[-1]
    x = x_ref[...].astype(jnp.float32)                     # (bn, c_in, l_pad)
    h = [x[:, ci, :] for ci in range(c_in)]                # per-channel (bn, l_pad)

    # Encoder: valid convs never read past the previous layer's valid range,
    # so no masking between them.
    h = _conv1d(h, par_ref, *offs[0], c_in, c_conv, 3);  l = l_in - 2
    h = _conv1d(h, par_ref, *offs[1], c_conv, c_conv, 3); l -= 2
    h = _conv1d(h, par_ref, *offs[2], c_conv, c_conv, 2); l -= 1          # latent

    # Decoder: each ConvTranspose reads x[t-k] for t-k up to l_out-1, so the tail
    # beyond the valid length must be zero before every transposed conv.
    ids = jax.lax.broadcasted_iota(jnp.int32, (bn, l_pad), 1)             # hoisted, reused
    mask = ids < l
    h = [jnp.where(mask, p, 0.0) for p in h]
    h = _convt1d(h, par_ref, *offs[3], c_conv, c_conv, 2); l += 1
    mask = ids < l
    h = [jnp.where(mask, p, 0.0) for p in h]
    h = _convt1d(h, par_ref, *offs[4], c_conv, c_conv, 3); l += 2
    mask = ids < l
    h = [jnp.where(mask, p, 0.0) for p in h]
    h = _convt1d(h, par_ref, *offs[5], c_conv, c_in, 3);   l += 2
    # Tail beyond l_in is sliced away in the wrapper -> single full-width store.
    out_ref[...] = jnp.stack(h, axis=1).astype(out_ref.dtype)


def _pack_params(params):
    """Pack the six (weight, bias) pairs into one flat f32 vector (single SMEM operand).

    Returns (packed_vector, offsets) with offsets[i] = (w_off, b_off) as static ints.
    """
    parts, offs, cur = [], [], 0
    for i in range(0, len(params), 2):
        w = jnp.asarray(params[i], jnp.float32).reshape(-1)
        b = jnp.asarray(params[i + 1], jnp.float32).reshape(-1)
        offs.append((cur, cur + w.shape[0]))
        parts += [w, b]
        cur += int(w.shape[0]) + int(b.shape[0])
    return jnp.concatenate(parts), tuple(offs)


def auto_encoder_forward(x, params, *, input_size=1, nb_channel_conv=3, batch_block=64):
    """x: (N, input_size, L) float32.  Returns dec_out: (N, input_size, L)."""
    n, c_in, l = x.shape
    assert c_in == input_size
    assert l >= 6, "encoder shrinks L by 5; need L >= 6"
    f32 = jnp.float32

    # Natural (N, C, L) order (no HBM transposes); length padded lane-dense to 128.
    l_pad = max(LANE, ((l + LANE - 1) // LANE) * LANE)
    n8 = ((n + 7) // 8) * 8                                # batch padded to sublane multiple
    bn = min(max(8, (batch_block // 8) * 8), n8)           # batch tile, always a multiple of 8
    n_pad = ((n8 + bn - 1) // bn) * bn

    xp = jnp.pad(x.astype(f32), ((0, n_pad - n), (0, 0), (0, l_pad - l)))
    packed, offs = _pack_params(params)

    kernel = functools.partial(_autoencoder_kernel, c_in=input_size,
                               c_conv=nb_channel_conv, l_in=l, offs=offs)

    # Per-block VMEM: double-buffered (in + out) blocks, a few hundred KiB at most at
    # bn=64 -- far below the scoped limit on v5e/v6e/v7x. The batch grid axis is
    # "parallel" so it shards across TensorCores on v7x when n_pad // bn >= 2.
    out = pl.pallas_call(
        kernel,
        out_shape=jax.ShapeDtypeStruct((n_pad, input_size, l_pad), f32),
        grid=(n_pad // bn,),
        in_specs=[pl.BlockSpec((bn, c_in, l_pad), lambda b: (b, 0, 0)),
                  pl.BlockSpec(memory_space=pltpu.MemorySpace.SMEM)],
        out_specs=pl.BlockSpec((bn, input_size, l_pad), lambda b: (b, 0, 0)),
        compiler_params=pltpu.CompilerParams(dimension_semantics=("parallel",)),
    )(xp, packed)

    return out[:n, :, :l]


# ----------------------- pure-numpy reference (for checking) -----------------------
def _np_leaky(v):
    return np.where(v >= 0, v, NEG_SLOPE * v)


def _np_conv(x, w, b):
    n, cin, l = x.shape
    cout, _, k = w.shape
    lo = l - k + 1
    y = np.zeros((n, cout, lo), np.float32)
    for bi in range(n):
        for co in range(cout):
            for t in range(lo):
                y[bi, co, t] = b[co] + sum(
                    w[co, ci, kk] * x[bi, ci, t + kk]
                    for ci in range(cin) for kk in range(k))
    return y


def _np_convt(x, w, b):
    n, cin, l = x.shape
    _, cout, k = w.shape
    lo = l + k - 1
    y = np.zeros((n, cout, lo), np.float32)
    for bi in range(n):
        for co in range(cout):
            y[bi, co, :] += b[co]
            for ci in range(cin):
                for s in range(l):
                    for kk in range(k):
                        y[bi, co, s + kk] += w[ci, co, kk] * x[bi, ci, s]
    return y


def _np_forward(x, params):
    (w1, b1, w2, b2, w3, b3, wt1, bt1, wt2, bt2, wt3, bt3) = [np.asarray(p) for p in params]
    x = np.asarray(x, np.float32)
    h = _np_leaky(_np_conv(x, w1, b1))
    h = _np_leaky(_np_conv(h, w2, b2))
    h = _np_leaky(_np_conv(h, w3, b3))
    h = _np_leaky(_np_convt(h, wt1, bt1))
    h = _np_leaky(_np_convt(h, wt2, bt2))
    return _np_leaky(_np_convt(h, wt3, bt3))


if __name__ == "__main__":
    INPUT_SIZE = 1
    C = 3          # nb_channel_conv
    N = 2          # batch
    L = 16         # sequence length

    key = jax.random.PRNGKey(0)
    keys = jax.random.split(key, 13)

    def init(k, shape, scale=0.2):
        return scale * jax.random.normal(k, shape, jnp.float32)

    params = (
        init(keys[0], (C, INPUT_SIZE, 3)), init(keys[1], (C,)),                 # conv1
        init(keys[2], (C, C, 3)),          init(keys[3], (C,)),                 # conv2
        init(keys[4], (C, C, 2)),          init(keys[5], (C,)),                 # conv3
        init(keys[6], (C, C, 2)),          init(keys[7], (C,)),                 # conv1_t (in,out,k)
        init(keys[8], (C, C, 3)),          init(keys[9], (C,)),                 # conv2_t
        init(keys[10], (C, INPUT_SIZE, 3)), init(keys[11], (INPUT_SIZE,)),      # conv3_t
    )

    x = jax.random.normal(keys[12], (N, INPUT_SIZE, L), jnp.float32)

    dec_out = auto_encoder_forward(x, params, input_size=INPUT_SIZE, nb_channel_conv=C)
    dec_out = jax.block_until_ready(dec_out)

    ref = _np_forward(x, params)
    assert dec_out.shape == (N, INPUT_SIZE, L), dec_out.shape
    np.testing.assert_allclose(np.asarray(dec_out), ref, rtol=1e-4, atol=1e-5)

    print("KERNEL_OK")
</pallas_src>

<mosaic_0001>
module attributes {stable_mosaic.version = 11 : i64} {
  func.func @_autoencoder_kernel(%arg0: i32, %arg1: memref<8x1x128xf32, #tpu.memory_space<vmem>>, %arg2: memref<124xf32, #tpu.memory_space<smem>>, %arg3: memref<8x1x128xf32, #tpu.memory_space<vmem>>) attributes {dimension_semantics = [#tpu.dimension_semantics<parallel>], iteration_bounds = array<i64: 1>, scalar_prefetch = 0 : i64, scratch_operands = 0 : i64, tpu.core_type = #tpu.core_type<tc>, window_params = [{transform_indices = @transform_0, window_bounds = array<i64: 8, 1, 128>}, {transform_indices = @transform_1, window_bounds = array<i64: 124>}, {transform_indices = @transform_2, window_bounds = array<i64: 8, 1, 128>}]} {
    %c0 = arith.constant 0 : index
    %c0_0 = arith.constant 0 : index
    %c0_1 = arith.constant 0 : index
    %0 = vector.load %arg1[%c0, %c0_0, %c0_1] : memref<8x1x128xf32, #tpu.memory_space<vmem>>, vector<8x1x128xf32>
    %1 = vector.shape_cast %0 : vector<8x1x128xf32> to vector<8x128xf32>
    %c9 = arith.constant 9 : index
    %2 = memref.load %arg2[%c9] : memref<124xf32, #tpu.memory_space<smem>>
    %3 = vector.broadcast %2 : f32 to vector<8x128xf32>
    %c10 = arith.constant 10 : index
    %4 = memref.load %arg2[%c10] : memref<124xf32, #tpu.memory_space<smem>>
    %5 = vector.broadcast %4 : f32 to vector<8x128xf32>
    %c11 = arith.constant 11 : index
    %6 = memref.load %arg2[%c11] : memref<124xf32, #tpu.memory_space<smem>>
    %7 = vector.broadcast %6 : f32 to vector<8x128xf32>
    %c0_2 = arith.constant 0 : index
    %8 = memref.load %arg2[%c0_2] : memref<124xf32, #tpu.memory_space<smem>>
    %9 = vector.broadcast %8 : f32 to vector<8x128xf32>
    %10 = arith.mulf %9, %1 : vector<8x128xf32>
    %11 = arith.addf %3, %10 : vector<8x128xf32>
    %c3 = arith.constant 3 : index
    %12 = memref.load %arg2[%c3] : memref<124xf32, #tpu.memory_space<smem>>
    %13 = vector.broadcast %12 : f32 to vector<8x128xf32>
    %14 = arith.mulf %13, %1 : vector<8x128xf32>
    %15 = arith.addf %5, %14 : vector<8x128xf32>
    %c6 = arith.constant 6 : index
    %16 = memref.load %arg2[%c6] : memref<124xf32, #tpu.memory_space<smem>>
    %17 = vector.broadcast %16 : f32 to vector<8x128xf32>
    %18 = arith.mulf %17, %1 : vector<8x128xf32>
    %19 = arith.addf %7, %18 : vector<8x128xf32>
    %cst = arith.constant 0.000000e+00 : f32
    %20 = vector.broadcast %cst : f32 to vector<8x1xf32>
    %21 = vector.extract_strided_slice %1 {offsets = [0, 1], sizes = [8, 127], strides = [1, 1]} : vector<8x128xf32> to vector<8x127xf32>
    %22 = tpu.concatenate %21, %20 in 1 : vector<8x127xf32>, vector<8x1xf32> -> vector<8x128xf32>
    %c1 = arith.constant 1 : index
    %23 = memref.load %arg2[%c1] : memref<124xf32, #tpu.memory_space<smem>>
    %24 = vector.broadcast %23 : f32 to vector<8x128xf32>
    %25 = arith.mulf %24, %22 : vector<8x128xf32>
    %26 = arith.addf %11, %25 : vector<8x128xf32>
    %c4 = arith.constant 4 : index
    %27 = memref.load %arg2[%c4] : memref<124xf32, #tpu.memory_space<smem>>
    %28 = vector.broadcast %27 : f32 to vector<8x128xf32>
    %29 = arith.mulf %28, %22 : vector<8x128xf32>
    %30 = arith.addf %15, %29 : vector<8x128xf32>
    %c7 = arith.constant 7 : index
    %31 = memref.load %arg2[%c7] : memref<124xf32, #tpu.memory_space<smem>>
    %32 = vector.broadcast %31 : f32 to vector<8x128xf32>
    %33 = arith.mulf %32, %22 : vector<8x128xf32>
    %34 = arith.addf %19, %33 : vector<8x128xf32>
    %cst_3 = arith.constant 0.000000e+00 : f32
    %35 = vector.broadcast %cst_3 : f32 to vector<8x2xf32>
    %36 = vector.extract_strided_slice %1 {offsets = [0, 2], sizes = [8, 126], strides = [1, 1]} : vector<8x128xf32> to vector<8x126xf32>
    %37 = tpu.concatenate %36, %35 in 1 : vector<8x126xf32>, vector<8x2xf32> -> vector<8x128xf32>
    %c2 = arith.constant 2 : index
    %38 = memref.load %arg2[%c2] : memref<124xf32, #tpu.memory_space<smem>>
    %39 = vector.broadcast %38 : f32 to vector<8x128xf32>
    %40 = arith.mulf %39, %37 : vector<8x128xf32>
    %41 = arith.addf %26, %40 : vector<8x128xf32>
    %c5 = arith.constant 5 : index
    %42 = memref.load %arg2[%c5] : memref<124xf32, #tpu.memory_space<smem>>
    %43 = vector.broadcast %42 : f32 to vector<8x128xf32>
    %44 = arith.mulf %43, %37 : vector<8x128xf32>
    %45 = arith.addf %30, %44 : vector<8x128xf32>
    %c8 = arith.constant 8 : index
    %46 = memref.load %arg2[%c8] : memref<124xf32, #tpu.memory_space<smem>>
    %47 = vector.broadcast %46 : f32 to vector<8x128xf32>
    %48 = arith.mulf %47, %37 : vector<8x128xf32>
    %49 = arith.addf %34, %48 : vector<8x128xf32>
    %cst_4 = arith.constant 0.000000e+00 : f32
    %50 = vector.broadcast %cst_4 : f32 to vector<8x128xf32>
    %51 = arith.cmpf oge, %41, %50 : vector<8x128xf32>
    %cst_5 = arith.constant 0.00999999977 : f32
    %52 = vector.broadcast %cst_5 : f32 to vector<8x128xf32>
    %53 = arith.mulf %52, %41 : vector<8x128xf32>
    %54 = arith.select %51, %41, %53 : vector<8x128xi1>, vector<8x128xf32>
    %cst_6 = arith.constant 0.000000e+00 : f32
    %55 = vector.broadcast %cst_6 : f32 to vector<8x128xf32>
    %56 = arith.cmpf oge, %45, %55 : vector<8x128xf32>
    %cst_7 = arith.constant 0.00999999977 : f32
    %57 = vector.broadcast %cst_7 : f32 to vector<8x128xf32>
    %58 = arith.mulf %57, %45 : vector<8x128xf32>
    %59 = arith.select %56, %45, %58 : vector<8x128xi1>, vector<8x128xf32>
    %cst_8 = arith.constant 0.000000e+00 : f32
    %60 = vector.broadcast %cst_8 : f32 to vector<8x128xf32>
    %61 = arith.cmpf oge, %49, %60 : vector<8x128xf32>
    %cst_9 = arith.constant 0.00999999977 : f32
    %62 = vector.broadcast %cst_9 : f32 to vector<8x128xf32>
    %63 = arith.mulf %62, %49 : vector<8x128xf32>
    %64 = arith.select %61, %49, %63 : vector<8x128xi1>, vector<8x128xf32>
    %c39 = arith.constant 39 : index
    %65 = memref.load %arg2[%c39] : memref<124xf32, #tpu.memory_space<smem>>
    %66 = vector.broadcast %65 : f32 to vector<8x128xf32>
    %c40 = arith.constant 40 : index
    %67 = memref.load %arg2[%c40] : memref<124xf32, #tpu.memory_space<smem>>
    %68 = vector.broadcast %67 : f32 to vector<8x128xf32>
    %c41 = arith.constant 41 : index
    %69 = memref.load %arg2[%c41] : memref<124xf32, #tpu.memory_space<smem>>
    %70 = vector.broadcast %69 : f32 to vector<8x128xf32>
    %c12 = arith.constant 12 : index
    %71 = memref.load %arg2[%c12] : memref<124xf32, #tpu.memory_space<smem>>
    %72 = vector.broadcast %71 : f32 to vector<8x128xf32>
    %73 = arith.mulf %72, %54 : vector<8x128xf32>
    %74 = arith.addf %66, %73 : vector<8x128xf32>
    %c21 = arith.constant 21 : index
    %75 = memref.load %arg2[%c21] : memref<124xf32, #tpu.memory_space<smem>>
    %76 = vector.broadcast %75 : f32 to vector<8x128xf32>
    %77 = arith.mulf %76, %54 : vector<8x128xf32>
    %78 = arith.addf %68, %77 : vector<8x128xf32>
    %c30 = arith.constant 30 : index
    %79 = memref.load %arg2[%c30] : memref<124xf32, #tpu.memory_space<smem>>
    %80 = vector.broadcast %79 : f32 to vector<8x128xf32>
    %81 = arith.mulf %80, %54 : vector<8x128xf32>
    %82 = arith.addf %70, %81 : vector<8x128xf32>
    %c15 = arith.constant 15 : index
    %83 = memref.load %arg2[%c15] : memref<124xf32, #tpu.memory_space<smem>>
    %84 = vector.broadcast %83 : f32 to vector<8x128xf32>
    %85 = arith.mulf %84, %59 : vector<8x128xf32>
    %86 = arith.addf %74, %85 : vector<8x128xf32>
    %c24 = arith.constant 24 : index
    %87 = memref.load %arg2[%c24] : memref<124xf32, #tpu.memory_space<smem>>
    %88 = vector.broadcast %87 : f32 to vector<8x128xf32>
    %89 = arith.mulf %88, %59 : vector<8x128xf32>
    %90 = arith.addf %78, %89 : vector<8x128xf32>
    %c33 = arith.constant 33 : index
    %91 = memref.load %arg2[%c33] : memref<124xf32, #tpu.memory_space<smem>>
    %92 = vector.broadcast %91 : f32 to vector<8x128xf32>
    %93 = arith.mulf %92, %59 : vector<8x128xf32>
    %94 = arith.addf %82, %93 : vector<8x128xf32>
    %c18 = arith.constant 18 : index
    %95 = memref.load %arg2[%c18] : memref<124xf32, #tpu.memory_space<smem>>
    %96 = vector.broadcast %95 : f32 to vector<8x128xf32>
    %97 = arith.mulf %96, %64 : vector<8x128xf32>
    %98 = arith.addf %86, %97 : vector<8x128xf32>
    %c27 = arith.constant 27 : index
    %99 = memref.load %arg2[%c27] : memref<124xf32, #tpu.memory_space<smem>>
    %100 = vector.broadcast %99 : f32 to vector<8x128xf32>
    %101 = arith.mulf %100, %64 : vector<8x128xf32>
    %102 = arith.addf %90, %101 : vector<8x128xf32>
    %c36 = arith.constant 36 : index
    %103 = memref.load %arg2[%c36] : memref<124xf32, #tpu.memory_space<smem>>
    %104 = vector.broadcast %103 : f32 to vector<8x128xf32>
    %105 = arith.mulf %104, %64 : vector<8x128xf32>
    %106 = arith.addf %94, %105 : vector<8x128xf32>
    %cst_10 = arith.constant 0.000000e+00 : f32
    %107 = vector.broadcast %cst_10 : f32 to vector<8x1xf32>
    %108 = vector.extract_strided_slice %54 {offsets = [0, 1], sizes = [8, 127], strides = [1, 1]} : vector<8x128xf32> to vector<8x127xf32>
    %109 = tpu.concatenate %108, %107 in 1 : vector<8x127xf32>, vector<8x1xf32> -> vector<8x128xf32>
    %c13 = arith.constant 13 : index
    %110 = memref.load %arg2[%c13] : memref<124xf32, #tpu.memory_space<smem>>
    %111 = vector.broadcast %110 : f32 to vector<8x128xf32>
    %112 = arith.mulf %111, %109 : vector<8x128xf32>
    %113 = arith.addf %98, %112 : vector<8x128xf32>
    %c22 = arith.constant 22 : index
    %114 = memref.load %arg2[%c22] : memref<124xf32, #tpu.memory_space<smem>>
    %115 = vector.broadcast %114 : f32 to vector<8x128xf32>
    %116 = arith.mulf %115, %109 : vector<8x128xf32>
    %117 = arith.addf %102, %116 : vector<8x128xf32>
    %c31 = arith.constant 31 : index
    %118 = memref.load %arg2[%c31] : memref<124xf32, #tpu.memory_space<smem>>
    %119 = vector.broadcast %118 : f32 to vector<8x128xf32>
    %120 = arith.mulf %119, %109 : vector<8x128xf32>
    %121 = arith.addf %106, %120 : vector<8x128xf32>
    %cst_11 = arith.constant 0.000000e+00 : f32
    %122 = vector.broadcast %cst_11 : f32 to vector<8x1xf32>
    %123 = vector.extract_strided_slice %59 {offsets = [0, 1], sizes = [8, 127], strides = [1, 1]} : vector<8x128xf32> to vector<8x127xf32>
    %124 = tpu.concatenate %123, %122 in 1 : vector<8x127xf32>, vector<8x1xf32> -> vector<8x128xf32>
    %c16 = arith.constant 16 : index
    %125 = memref.load %arg2[%c16] : memref<124xf32, #tpu.memory_space<smem>>
    %126 = vector.broadcast %125 : f32 to vector<8x128xf32>
    %127 = arith.mulf %126, %124 : vector<8x128xf32>
    %128 = arith.addf %113, %127 : vector<8x128xf32>
    %c25 = arith.constant 25 : index
    %129 = memref.load %arg2[%c25] : memref<124xf32, #tpu.memory_space<smem>>
    %130 = vector.broadcast %129 : f32 to vector<8x128xf32>
    %131 = arith.mulf %130, %124 : vector<8x128xf32>
    %132 = arith.addf %117, %131 : vector<8x128xf32>
    %c34 = arith.constant 34 : index
    %133 = memref.load %arg2[%c34] : memref<124xf32, #tpu.memory_space<smem>>
    %134 = vector.broadcast %133 : f32 to vector<8x128xf32>
    %135 = arith.mulf %134, %124 : vector<8x128xf32>
    %136 = arith.addf %121, %135 : vector<8x128xf32>
    %cst_12 = arith.constant 0.000000e+00 : f32
    %137 = vector.broadcast %cst_12 : f32 to vector<8x1xf32>
    %138 = vector.extract_strided_slice %64 {offsets = [0, 1], sizes = [8, 127], strides = [1, 1]} : vector<8x128xf32> to vector<8x127xf32>
    %139 = tpu.concatenate %138, %137 in 1 : vector<8x127xf32>, vector<8x1xf32> -> vector<8x128xf32>
    %c19 = arith.constant 19 : index
    %140 = memref.load %arg2[%c19] : memref<124xf32, #tpu.memory_space<smem>>
    %141 = vector.broadcast %140 : f32 to vector<8x128xf32>
    %142 = arith.mulf %141, %139 : vector<8x128xf32>
    %143 = arith.addf %128, %142 : vector<8x128xf32>
    %c28 = arith.constant 28 : index
    %144 = memref.load %arg2[%c28] : memref<124xf32, #tpu.memory_space<smem>>
    %145 = vector.broadcast %144 : f32 to vector<8x128xf32>
    %146 = arith.mulf %145, %139 : vector<8x128xf32>
    %147 = arith.addf %132, %146 : vector<8x128xf32>
    %c37 = arith.constant 37 : index
    %148 = memref.load %arg2[%c37] : memref<124xf32, #tpu.memory_space<smem>>
    %149 = vector.broadcast %148 : f32 to vector<8x128xf32>
    %150 = arith.mulf %149, %139 : vector<8x128xf32>
    %151 = arith.addf %136, %150 : vector<8x128xf32>
    %cst_13 = arith.constant 0.000000e+00 : f32
    %152 = vector.broadcast %cst_13 : f32 to vector<8x2xf32>
    %153 = vector.extract_strided_slice %54 {offsets = [0, 2], sizes = [8, 126], strides = [1, 1]} : vector<8x128xf32> to vector<8x126xf32>
    %154 = tpu.concatenate %153, %152 in 1 : vector<8x126xf32>, vector<8x2xf32> -> vector<8x128xf32>
    %c14 = arith.constant 14 : index
    %155 = memref.load %arg2[%c14] : memref<124xf32, #tpu.memory_space<smem>>
    %156 = vector.broadcast %155 : f32 to vector<8x128xf32>
    %157 = arith.mulf %156, %154 : vector<8x128xf32>
    %158 = arith.addf %143, %157 : vector<8x128xf32>
    %c23 = arith.constant 23 : index
    %159 = memref.load %arg2[%c23] : memref<124xf32, #tpu.memory_space<smem>>
    %160 = vector.broadcast %159 : f32 to vector<8x128xf32>
    %161 = arith.mulf %160, %154 : vector<8x128xf32>
    %162 = arith.addf %147, %161 : vector<8x128xf32>
    %c32 = arith.constant 32 : index
    %163 = memref.load %arg2[%c32] : memref<124xf32, #tpu.memory_space<smem>>
    %164 = vector.broadcast %163 : f32 to vector<8x128xf32>
    %165 = arith.mulf %164, %154 : vector<8x128xf32>
    %166 = arith.addf %151, %165 : vector<8x128xf32>
    %cst_14 = arith.constant 0.000000e+00 : f32
    %167 = vector.broadcast %cst_14 : f32 to vector<8x2xf32>
    %168 = vector.extract_strided_slice %59 {offsets = [0, 2], sizes = [8, 126], strides = [1, 1]} : vector<8x128xf32> to vector<8x126xf32>
    %169 = tpu.concatenate %168, %167 in 1 : vector<8x126xf32>, vector<8x2xf32> -> vector<8x128xf32>
    %c17 = arith.constant 17 : index
    %170 = memref.load %arg2[%c17] : memref<124xf32, #tpu.memory_space<smem>>
    %171 = vector.broadcast %170 : f32 to vector<8x128xf32>
    %172 = arith.mulf %171, %169 : vector<8x128xf32>
    %173 = arith.addf %158, %172 : vector<8x128xf32>
    %c26 = arith.constant 26 : index
    %174 = memref.load %arg2[%c26] : memref<124xf32, #tpu.memory_space<smem>>
    %175 = vector.broadcast %174 : f32 to vector<8x128xf32>
    %176 = arith.mulf %175, %169 : vector<8x128xf32>
    %177 = arith.addf %162, %176 : vector<8x128xf32>
    %c35 = arith.constant 35 : index
    %178 = memref.load %arg2[%c35] : memref<124xf32, #tpu.memory_space<smem>>
    %179 = vector.broadcast %178 : f32 to vector<8x128xf32>
    %180 = arith.mulf %179, %169 : vector<8x128xf32>
    %181 = arith.addf %166, %180 : vector<8x128xf32>
    %cst_15 = arith.constant 0.000000e+00 : f32
    %182 = vector.broadcast %cst_15 : f32 to vector<8x2xf32>
    %183 = vector.extract_strided_slice %64 {offsets = [0, 2], sizes = [8, 126], strides = [1, 1]} : vector<8x128xf32> to vector<8x126xf32>
    %184 = tpu.concatenate %183, %182 in 1 : vector<8x126xf32>, vector<8x2xf32> -> vector<8x128xf32>
    %c20 = arith.constant 20 : index
    %185 = memref.load %arg2[%c20] : memref<124xf32, #tpu.memory_space<smem>>
    %186 = vector.broadcast %185 : f32 to vector<8x128xf32>
    %187 = arith.mulf %186, %184 : vector<8x128xf32>
    %188 = arith.addf %173, %187 : vector<8x128xf32>
    %c29 = arith.constant 29 : index
    %189 = memref.load %arg2[%c29] : memref<124xf32, #tpu.memory_space<smem>>
    %190 = vector.broadcast %189 : f32 to vector<8x128xf32>
    %191 = arith.mulf %190, %184 : vector<8x128xf32>
    %192 = arith.addf %177, %191 : vector<8x128xf32>
    %c38 = arith.constant 38 : index
    %193 = memref.load %arg2[%c38] : memref<124xf32, #tpu.memory_space<smem>>
    %194 = vector.broadcast %193 : f32 to vector<8x128xf32>
    %195 = arith.mulf %194, %184 : vector<8x128xf32>
    %196 = arith.addf %181, %195 : vector<8x128xf32>
    %cst_16 = arith.constant 0.000000e+00 : f32
    %197 = vector.broadcast %cst_16 : f32 to vector<8x128xf32>
    %198 = arith.cmpf oge, %188, %197 : vector<8x128xf32>
    %cst_17 = arith.constant 0.00999999977 : f32
    %199 = vector.broadcast %cst_17 : f32 to vector<8x128xf32>
    %200 = arith.mulf %199, %188 : vector<8x128xf32>
    %201 = arith.select %198, %188, %200 : vector<8x128xi1>, vector<8x128xf32>
    %cst_18 = arith.constant 0.000000e+00 : f32
    %202 = vector.broadcast %cst_18 : f32 to vector<8x128xf32>
    %203 = arith.cmpf oge, %192, %202 : vector<8x128xf32>
    %cst_19 = arith.constant 0.00999999977 : f32
    %204 = vector.broadcast %cst_19 : f32 to vector<8x128xf32>
    %205 = arith.mulf %204, %192 : vector<8x128xf32>
    %206 = arith.select %203, %192, %205 : vector<8x128xi1>, vector<8x128xf32>
    %cst_20 = arith.constant 0.000000e+00 : f32
    %207 = vector.broadcast %cst_20 : f32 to vector<8x128xf32>
    %208 = arith.cmpf oge, %196, %207 : vector<8x128xf32>
    %cst_21 = arith.constant 0.00999999977 : f32
    %209 = vector.broadcast %cst_21 : f32 to vector<8x128xf32>
    %210 = arith.mulf %209, %196 : vector<8x128xf32>
    %211 = arith.select %208, %196, %210 : vector<8x128xi1>, vector<8x128xf32>
    %c60 = arith.constant 60 : index
    %212 = memref.load %arg2[%c60] : memref<124xf32, #tpu.memory_space<smem>>
    %213 = vector.broadcast %212 : f32 to vector<8x128xf32>
    %c61 = arith.constant 61 : index
    %214 = memref.load %arg2[%c61] : memref<124xf32, #tpu.memory_space<smem>>
    %215 = vector.broadcast %214 : f32 to vector<8x128xf32>
    %c62 = arith.constant 62 : index
    %216 = memref.load %arg2[%c62] : memref<124xf32, #tpu.memory_space<smem>>
    %217 = vector.broadcast %216 : f32 to vector<8x128xf32>
    %c42 = arith.constant 42 : index
    %218 = memref.load %arg2[%c42] : memref<124xf32, #tpu.memory_space<smem>>
    %219 = vector.broadcast %218 : f32 to vector<8x128xf32>
    %220 = arith.mulf %219, %201 : vector<8x128xf32>
    %221 = arith.addf %213, %220 : vector<8x128xf32>
    %c48 = arith.constant 48 : index
    %222 = memref.load %arg2[%c48] : memref<124xf32, #tpu.memory_space<smem>>
    %223 = vector.broadcast %222 : f32 to vector<8x128xf32>
    %224 = arith.mulf %223, %201 : vector<8x128xf32>
    %225 = arith.addf %215, %224 : vector<8x128xf32>
    %c54 = arith.constant 54 : index
    %226 = memref.load %arg2[%c54] : memref<124xf32, #tpu.memory_space<smem>>
    %227 = vector.broadcast %226 : f32 to vector<8x128xf32>
    %228 = arith.mulf %227, %201 : vector<8x128xf32>
    %229 = arith.addf %217, %228 : vector<8x128xf32>
    %c44 = arith.constant 44 : index
    %230 = memref.load %arg2[%c44] : memref<124xf32, #tpu.memory_space<smem>>
    %231 = vector.broadcast %230 : f32 to vector<8x128xf32>
    %232 = arith.mulf %231, %206 : vector<8x128xf32>
    %233 = arith.addf %221, %232 : vector<8x128xf32>
    %c50 = arith.constant 50 : index
    %234 = memref.load %arg2[%c50] : memref<124xf32, #tpu.memory_space<smem>>
    %235 = vector.broadcast %234 : f32 to vector<8x128xf32>
    %236 = arith.mulf %235, %206 : vector<8x128xf32>
    %237 = arith.addf %225, %236 : vector<8x128xf32>
    %c56 = arith.constant 56 : index
    %238 = memref.load %arg2[%c56] : memref<124xf32, #tpu.memory_space<smem>>
    %239 = vector.broadcast %238 : f32 to vector<8x128xf32>
    %240 = arith.mulf %239, %206 : vector<8x128xf32>
    %241 = arith.addf %229, %240 : vector<8x128xf32>
    %c46 = arith.constant 46 : index
    %242 = memref.load %arg2[%c46] : memref<124xf32, #tpu.memory_space<smem>>
    %243 = vector.broadcast %242 : f32 to vector<8x128xf32>
    %244 = arith.mulf %243, %211 : vector<8x128xf32>
    %245 = arith.addf %233, %244 : vector<8x128xf32>
    %c52 = arith.constant 52 : index
    %246 = memref.load %arg2[%c52] : memref<124xf32, #tpu.memory_space<smem>>
    %247 = vector.broadcast %246 : f32 to vector<8x128xf32>
    %248 = arith.mulf %247, %211 : vector<8x128xf32>
    %249 = arith.addf %237, %248 : vector<8x128xf32>
    %c58 = arith.constant 58 : index
    %250 = memref.load %arg2[%c58] : memref<124xf32, #tpu.memory_space<smem>>
    %251 = vector.broadcast %250 : f32 to vector<8x128xf32>
    %252 = arith.mulf %251, %211 : vector<8x128xf32>
    %253 = arith.addf %241, %252 : vector<8x128xf32>
    %cst_22 = arith.constant 0.000000e+00 : f32
    %254 = vector.broadcast %cst_22 : f32 to vector<8x1xf32>
    %255 = vector.extract_strided_slice %201 {offsets = [0, 1], sizes = [8, 127], strides = [1, 1]} : vector<8x128xf32> to vector<8x127xf32>
    %256 = tpu.concatenate %255, %254 in 1 : vector<8x127xf32>, vector<8x1xf32> -> vector<8x128xf32>
    %c43 = arith.constant 43 : index
    %257 = memref.load %arg2[%c43] : memref<124xf32, #tpu.memory_space<smem>>
    %258 = vector.broadcast %257 : f32 to vector<8x128xf32>
    %259 = arith.mulf %258, %256 : vector<8x128xf32>
    %260 = arith.addf %245, %259 : vector<8x128xf32>
    %c49 = arith.constant 49 : index
    %261 = memref.load %arg2[%c49] : memref<124xf32, #tpu.memory_space<smem>>
    %262 = vector.broadcast %261 : f32 to vector<8x128xf32>
    %263 = arith.mulf %262, %256 : vector<8x128xf32>
    %264 = arith.addf %249, %263 : vector<8x128xf32>
    %c55 = arith.constant 55 : index
    %265 = memref.load %arg2[%c55] : memref<124xf32, #tpu.memory_space<smem>>
    %266 = vector.broadcast %265 : f32 to vector<8x128xf32>
    %267 = arith.mulf %266, %256 : vector<8x128xf32>
    %268 = arith.addf %253, %267 : vector<8x128xf32>
    %cst_23 = arith.constant 0.000000e+00 : f32
    %269 = vector.broadcast %cst_23 : f32 to vector<8x1xf32>
    %270 = vector.extract_strided_slice %206 {offsets = [0, 1], sizes = [8, 127], strides = [1, 1]} : vector<8x128xf32> to vector<8x127xf32>
    %271 = tpu.concatenate %270, %269 in 1 : vector<8x127xf32>, vector<8x1xf32> -> vector<8x128xf32>
    %c45 = arith.constant 45 : index
    %272 = memref.load %arg2[%c45] : memref<124xf32, #tpu.memory_space<smem>>
    %273 = vector.broadcast %272 : f32 to vector<8x128xf32>
    %274 = arith.mulf %273, %271 : vector<8x128xf32>
    %275 = arith.addf %260, %274 : vector<8x128xf32>
    %c51 = arith.constant 51 : index
    %276 = memref.load %arg2[%c51] : memref<124xf32, #tpu.memory_space<smem>>
    %277 = vector.broadcast %276 : f32 to vector<8x128xf32>
    %278 = arith.mulf %277, %271 : vector<8x128xf32>
    %279 = arith.addf %264, %278 : vector<8x128xf32>
    %c57 = arith.constant 57 : index
    %280 = memref.load %arg2[%c57] : memref<124xf32, #tpu.memory_space<smem>>
    %281 = vector.broadcast %280 : f32 to vector<8x128xf32>
    %282 = arith.mulf %281, %271 : vector<8x128xf32>
    %283 = arith.addf %268, %282 : vector<8x128xf32>
    %cst_24 = arith.constant 0.000000e+00 : f32
    %284 = vector.broadcast %cst_24 : f32 to vector<8x1xf32>
    %285 = vector.extract_strided_slice %211 {offsets = [0, 1], sizes = [8, 127], strides = [1, 1]} : vector<8x128xf32> to vector<8x127xf32>
    %286 = tpu.concatenate %285, %284 in 1 : vector<8x127xf32>, vector<8x1xf32> -> vector<8x128xf32>
    %c47 = arith.constant 47 : index
    %287 = memref.load %arg2[%c47] : memref<124xf32, #tpu.memory_space<smem>>
    %288 = vector.broadcast %287 : f32 to vector<8x128xf32>
    %289 = arith.mulf %288, %286 : vector<8x128xf32>
    %290 = arith.addf %275, %289 : vector<8x128xf32>
    %c53 = arith.constant 53 : index
    %291 = memref.load %arg2[%c53] : memref<124xf32, #tpu.memory_space<smem>>
    %292 = vector.broadcast %291 : f32 to vector<8x128xf32>
    %293 = arith.mulf %292, %286 : vector<8x128xf32>
    %294 = arith.addf %279, %293 : vector<8x128xf32>
    %c59 = arith.constant 59 : index
    %295 = memref.load %arg2[%c59] : memref<124xf32, #tpu.memory_space<smem>>
    %296 = vector.broadcast %295 : f32 to vector<8x128xf32>
    %297 = arith.mulf %296, %286 : vector<8x128xf32>
    %298 = arith.addf %283, %297 : vector<8x128xf32>
    %cst_25 = arith.constant 0.000000e+00 : f32
    %299 = vector.broadcast %cst_25 : f32 to vector<8x128xf32>
    %300 = arith.cmpf oge, %290, %299 : vector<8x128xf32>
    %cst_26 = arith.constant 0.00999999977 : f32
    %301 = vector.broadcast %cst_26 : f32 to vector<8x128xf32>
    %302 = arith.mulf %301, %290 : vector<8x128xf32>
    %303 = arith.select %300, %290, %302 : vector<8x128xi1>, vector<8x128xf32>
    %cst_27 = arith.constant 0.000000e+00 : f32
    %304 = vector.broadcast %cst_27 : f32 to vector<8x128xf32>
    %305 = arith.cmpf oge, %294, %304 : vector<8x128xf32>
    %cst_28 = arith.constant 0.00999999977 : f32
    %306 = vector.broadcast %cst_28 : f32 to vector<8x128xf32>
    %307 = arith.mulf %306, %294 : vector<8x128xf32>
    %308 = arith.select %305, %294, %307 : vector<8x128xi1>, vector<8x128xf32>
    %cst_29 = arith.constant 0.000000e+00 : f32
    %309 = vector.broadcast %cst_29 : f32 to vector<8x128xf32>
    %310 = arith.cmpf oge, %298, %309 : vector<8x128xf32>
    %cst_30 = arith.constant 0.00999999977 : f32
    %311 = vector.broadcast %cst_30 : f32 to vector<8x128xf32>
    %312 = arith.mulf %311, %298 : vector<8x128xf32>
    %313 = arith.select %310, %298, %312 : vector<8x128xi1>, vector<8x128xf32>
    %314 = tpu.iota {dimensions = array<i32: 1>} : vector<8x128xi32>
    %c11_i32 = arith.constant 11 : i32
    %315 = vector.broadcast %c11_i32 : i32 to vector<8x128xi32>
    %316 = arith.cmpi slt, %314, %315 : vector<8x128xi32>
    %cst_31 = arith.constant 0.000000e+00 : f32
    %317 = vector.broadcast %cst_31 : f32 to vector<8x128xf32>
    %318 = arith.select %316, %303, %317 : vector<8x128xi1>, vector<8x128xf32>
    %cst_32 = arith.constant 0.000000e+00 : f32
    %319 = vector.broadcast %cst_32 : f32 to vector<8x128xf32>
    %320 = arith.select %316, %308, %319 : vector<8x128xi1>, vector<8x128xf32>
    %cst_33 = arith.constant 0.000000e+00 : f32
    %321 = vector.broadcast %cst_33 : f32 to vector<8x128xf32>
    %322 = arith.select %316, %313, %321 : vector<8x128xi1>, vector<8x128xf32>
    %c81 = arith.constant 81 : index
    %323 = memref.load %arg2[%c81] : memref<124xf32, #tpu.memory_space<smem>>
    %324 = vector.broadcast %323 : f32 to vector<8x128xf32>
    %c82 = arith.constant 82 : index
    %325 = memref.load %arg2[%c82] : memref<124xf32, #tpu.memory_space<smem>>
    %326 = vector.broadcast %325 : f32 to vector<8x128xf32>
    %c83 = arith.constant 83 : index
    %327 = memref.load %arg2[%c83] : memref<124xf32, #tpu.memory_space<smem>>
    %328 = vector.broadcast %327 : f32 to vector<8x128xf32>
    %c63 = arith.constant 63 : index
    %329 = memref.load %arg2[%c63] : memref<124xf32, #tpu.memory_space<smem>>
    %330 = vector.broadcast %329 : f32 to vector<8x128xf32>
    %331 = arith.mulf %330, %318 : vector<8x128xf32>
    %332 = arith.addf %324, %331 : vector<8x128xf32>
    %c65 = arith.constant 65 : index
    %333 = memref.load %arg2[%c65] : memref<124xf32, #tpu.memory_space<smem>>
    %334 = vector.broadcast %333 : f32 to vector<8x128xf32>
    %335 = arith.mulf %334, %318 : vector<8x128xf32>
    %336 = arith.addf %326, %335 : vector<8x128xf32>
    %c67 = arith.constant 67 : index
    %337 = memref.load %arg2[%c67] : memref<124xf32, #tpu.memory_space<smem>>
    %338 = vector.broadcast %337 : f32 to vector<8x128xf32>
    %339 = arith.mulf %338, %318 : vector<8x128xf32>
    %340 = arith.addf %328, %339 : vector<8x128xf32>
    %c69 = arith.constant 69 : index
    %341 = memref.load %arg2[%c69] : memref<124xf32, #tpu.memory_space<smem>>
    %342 = vector.broadcast %341 : f32 to vector<8x128xf32>
    %343 = arith.mulf %342, %320 : vector<8x128xf32>
    %344 = arith.addf %332, %343 : vector<8x128xf32>
    %c71 = arith.constant 71 : index
    %345 = memref.load %arg2[%c71] : memref<124xf32, #tpu.memory_space<smem>>
    %346 = vector.broadcast %345 : f32 to vector<8x128xf32>
    %347 = arith.mulf %346, %320 : vector<8x128xf32>
    %348 = arith.addf %336, %347 : vector<8x128xf32>
    %c73 = arith.constant 73 : index
    %349 = memref.load %arg2[%c73] : memref<124xf32, #tpu.memory_space<smem>>
    %350 = vector.broadcast %349 : f32 to vector<8x128xf32>
    %351 = arith.mulf %350, %320 : vector<8x128xf32>
    %352 = arith.addf %340, %351 : vector<8x128xf32>
    %c75 = arith.constant 75 : index
    %353 = memref.load %arg2[%c75] : memref<124xf32, #tpu.memory_space<smem>>
    %354 = vector.broadcast %353 : f32 to vector<8x128xf32>
    %355 = arith.mulf %354, %322 : vector<8x128xf32>
    %356 = arith.addf %344, %355 : vector<8x128xf32>
    %c77 = arith.constant 77 : index
    %357 = memref.load %arg2[%c77] : memref<124xf32, #tpu.memory_space<smem>>
    %358 = vector.broadcast %357 : f32 to vector<8x128xf32>
    %359 = arith.mulf %358, %322 : vector<8x128xf32>
    %360 = arith.addf %348, %359 : vector<8x128xf32>
    %c79 = arith.constant 79 : index
    %361 = memref.load %arg2[%c79] : memref<124xf32, #tpu.memory_space<smem>>
    %362 = vector.broadcast %361 : f32 to vector<8x128xf32>
    %363 = arith.mulf %362, %322 : vector<8x128xf32>
    %364 = arith.addf %352, %363 : vector<8x128xf32>
    %cst_34 = arith.constant 0.000000e+00 : f32
    %365 = vector.broadcast %cst_34 : f32 to vector<8x1xf32>
    %366 = vector.extract_strided_slice %318 {offsets = [0, 0], sizes = [8, 127], strides = [1, 1]} : vector<8x128xf32> to vector<8x127xf32>
    %367 = tpu.concatenate %365, %366 in 1 : vector<8x1xf32>, vector<8x127xf32> -> vector<8x128xf32>
    %c64 = arith.constant 64 : index
    %368 = memref.load %arg2[%c64] : memref<124xf32, #tpu.memory_space<smem>>
    %369 = vector.broadcast %368 : f32 to vector<8x128xf32>
    %370 = arith.mulf %369, %367 : vector<8x128xf32>
    %371 = arith.addf %356, %370 : vector<8x128xf32>
    %c66 = arith.constant 66 : index
    %372 = memref.load %arg2[%c66] : memref<124xf32, #tpu.memory_space<smem>>
    %373 = vector.broadcast %372 : f32 to vector<8x128xf32>
    %374 = arith.mulf %373, %367 : vector<8x128xf32>
    %375 = arith.addf %360, %374 : vector<8x128xf32>
    %c68 = arith.constant 68 : index
    %376 = memref.load %arg2[%c68] : memref<124xf32, #tpu.memory_space<smem>>
    %377 = vector.broadcast %376 : f32 to vector<8x128xf32>
    %378 = arith.mulf %377, %367 : vector<8x128xf32>
    %379 = arith.addf %364, %378 : vector<8x128xf32>
    %cst_35 = arith.constant 0.000000e+00 : f32
    %380 = vector.broadcast %cst_35 : f32 to vector<8x1xf32>
    %381 = vector.extract_strided_slice %320 {offsets = [0, 0], sizes = [8, 127], strides = [1, 1]} : vector<8x128xf32> to vector<8x127xf32>
    %382 = tpu.concatenate %380, %381 in 1 : vector<8x1xf32>, vector<8x127xf32> -> vector<8x128xf32>
    %c70 = arith.constant 70 : index
    %383 = memref.load %arg2[%c70] : memref<124xf32, #tpu.memory_space<smem>>
    %384 = vector.broadcast %383 : f32 to vector<8x128xf32>
    %385 = arith.mulf %384, %382 : vector<8x128xf32>
    %386 = arith.addf %371, %385 : vector<8x128xf32>
    %c72 = arith.constant 72 : index
    %387 = memref.load %arg2[%c72] : memref<124xf32, #tpu.memory_space<smem>>
    %388 = vector.broadcast %387 : f32 to vector<8x128xf32>
    %389 = arith.mulf %388, %382 : vector<8x128xf32>
    %390 = arith.addf %375, %389 : vector<8x128xf32>
    %c74 = arith.constant 74 : index
    %391 = memref.load %arg2[%c74] : memref<124xf32, #tpu.memory_space<smem>>
    %392 = vector.broadcast %391 : f32 to vector<8x128xf32>
    %393 = arith.mulf %392, %382 : vector<8x128xf32>
    %394 = arith.addf %379, %393 : vector<8x128xf32>
    %cst_36 = arith.constant 0.000000e+00 : f32
    %395 = vector.broadcast %cst_36 : f32 to vector<8x1xf32>
    %396 = vector.extract_strided_slice %322 {offsets = [0, 0], sizes = [8, 127], strides = [1, 1]} : vector<8x128xf32> to vector<8x127xf32>
    %397 = tpu.concatenate %395, %396 in 1 : vector<8x1xf32>, vector<8x127xf32> -> vector<8x128xf32>
    %c76 = arith.constant 76 : index
    %398 = memref.load %arg2[%c76] : memref<124xf32, #tpu.memory_space<smem>>
    %399 = vector.broadcast %398 : f32 to vector<8x128xf32>
    %400 = arith.mulf %399, %397 : vector<8x128xf32>
    %401 = arith.addf %386, %400 : vector<8x128xf32>
    %c78 = arith.constant 78 : index
    %402 = memref.load %arg2[%c78] : memref<124xf32, #tpu.memory_space<smem>>
    %403 = vector.broadcast %402 : f32 to vector<8x128xf32>
    %404 = arith.mulf %403, %397 : vector<8x128xf32>
    %405 = arith.addf %390, %404 : vector<8x128xf32>
    %c80 = arith.constant 80 : index
    %406 = memref.load %arg2[%c80] : memref<124xf32, #tpu.memory_space<smem>>
    %407 = vector.broadcast %406 : f32 to vector<8x128xf32>
    %408 = arith.mulf %407, %397 : vector<8x128xf32>
    %409 = arith.addf %394, %408 : vector<8x128xf32>
    %cst_37 = arith.constant 0.000000e+00 : f32
    %410 = vector.broadcast %cst_37 : f32 to vector<8x128xf32>
    %411 = arith.cmpf oge, %401, %410 : vector<8x128xf32>
    %cst_38 = arith.constant 0.00999999977 : f32
    %412 = vector.broadcast %cst_38 : f32 to vector<8x128xf32>
    %413 = arith.mulf %412, %401 : vector<8x128xf32>
    %414 = arith.select %411, %401, %413 : vector<8x128xi1>, vector<8x128xf32>
    %cst_39 = arith.constant 0.000000e+00 : f32
    %415 = vector.broadcast %cst_39 : f32 to vector<8x128xf32>
    %416 = arith.cmpf oge, %405, %415 : vector<8x128xf32>
    %cst_40 = arith.constant 0.00999999977 : f32
    %417 = vector.broadcast %cst_40 : f32 to vector<8x128xf32>
    %418 = arith.mulf %417, %405 : vector<8x128xf32>
    %419 = arith.select %416, %405, %418 : vector<8x128xi1>, vector<8x128xf32>
    %cst_41 = arith.constant 0.000000e+00 : f32
    %420 = vector.broadcast %cst_41 : f32 to vector<8x128xf32>
    %421 = arith.cmpf oge, %409, %420 : vector<8x128xf32>
    %cst_42 = arith.constant 0.00999999977 : f32
    %422 = vector.broadcast %cst_42 : f32 to vector<8x128xf32>
    %423 = arith.mulf %422, %409 : vector<8x128xf32>
    %424 = arith.select %421, %409, %423 : vector<8x128xi1>, vector<8x128xf32>
    %c12_i32 = arith.constant 12 : i32
    %425 = vector.broadcast %c12_i32 : i32 to vector<8x128xi32>
    %426 = arith.cmpi slt, %314, %425 : vector<8x128xi32>
    %cst_43 = arith.constant 0.000000e+00 : f32
    %427 = vector.broadcast %cst_43 : f32 to vector<8x128xf32>
    %428 = arith.select %426, %414, %427 : vector<8x128xi1>, vector<8x128xf32>
    %cst_44 = arith.constant 0.000000e+00 : f32
    %429 = vector.broadcast %cst_44 : f32 to vector<8x128xf32>
    %430 = arith.select %426, %419, %429 : vector<8x128xi1>, vector<8x128xf32>
    %cst_45 = arith.constant 0.000000e+00 : f32
    %431 = vector.broadcast %cst_45 : f32 to vector<8x128xf32>
    %432 = arith.select %426, %424, %431 : vector<8x128xi1>, vector<8x128xf32>
    %c111 = arith.constant 111 : index
    %433 = memref.load %arg2[%c111] : memref<124xf32, #tpu.memory_space<smem>>
    %434 = vector.broadcast %433 : f32 to vector<8x128xf32>
    %c112 = arith.constant 112 : index
    %435 = memref.load %arg2[%c112] : memref<124xf32, #tpu.memory_space<smem>>
    %436 = vector.broadcast %435 : f32 to vector<8x128xf32>
    %c113 = arith.constant 113 : index
    %437 = memref.load %arg2[%c113] : memref<124xf32, #tpu.memory_space<smem>>
    %438 = vector.broadcast %437 : f32 to vector<8x128xf32>
    %c84 = arith.constant 84 : index
    %439 = memref.load %arg2[%c84] : memref<124xf32, #tpu.memory_space<smem>>
    %440 = vector.broadcast %439 : f32 to vector<8x128xf32>
    %441 = arith.mulf %440, %428 : vector<8x128xf32>
    %442 = arith.addf %434, %441 : vector<8x128xf32>
    %c87 = arith.constant 87 : index
    %443 = memref.load %arg2[%c87] : memref<124xf32, #tpu.memory_space<smem>>
    %444 = vector.broadcast %443 : f32 to vector<8x128xf32>
    %445 = arith.mulf %444, %428 : vector<8x128xf32>
    %446 = arith.addf %436, %445 : vector<8x128xf32>
    %c90 = arith.constant 90 : index
    %447 = memref.load %arg2[%c90] : memref<124xf32, #tpu.memory_space<smem>>
    %448 = vector.broadcast %447 : f32 to vector<8x128xf32>
    %449 = arith.mulf %448, %428 : vector<8x128xf32>
    %450 = arith.addf %438, %449 : vector<8x128xf32>
    %c93 = arith.constant 93 : index
    %451 = memref.load %arg2[%c93] : memref<124xf32, #tpu.memory_space<smem>>
    %452 = vector.broadcast %451 : f32 to vector<8x128xf32>
    %453 = arith.mulf %452, %430 : vector<8x128xf32>
    %454 = arith.addf %442, %453 : vector<8x128xf32>
    %c96 = arith.constant 96 : index
    %455 = memref.load %arg2[%c96] : memref<124xf32, #tpu.memory_space<smem>>
    %456 = vector.broadcast %455 : f32 to vector<8x128xf32>
    %457 = arith.mulf %456, %430 : vector<8x128xf32>
    %458 = arith.addf %446, %457 : vector<8x128xf32>
    %c99 = arith.constant 99 : index
    %459 = memref.load %arg2[%c99] : memref<124xf32, #tpu.memory_space<smem>>
    %460 = vector.broadcast %459 : f32 to vector<8x128xf32>
    %461 = arith.mulf %460, %430 : vector<8x128xf32>
    %462 = arith.addf %450, %461 : vector<8x128xf32>
    %c102 = arith.constant 102 : index
    %463 = memref.load %arg2[%c102] : memref<124xf32, #tpu.memory_space<smem>>
    %464 = vector.broadcast %463 : f32 to vector<8x128xf32>
    %465 = arith.mulf %464, %432 : vector<8x128xf32>
    %466 = arith.addf %454, %465 : vector<8x128xf32>
    %c105 = arith.constant 105 : index
    %467 = memref.load %arg2[%c105] : memref<124xf32, #tpu.memory_space<smem>>
    %468 = vector.broadcast %467 : f32 to vector<8x128xf32>
    %469 = arith.mulf %468, %432 : vector<8x128xf32>
    %470 = arith.addf %458, %469 : vector<8x128xf32>
    %c108 = arith.constant 108 : index
    %471 = memref.load %arg2[%c108] : memref<124xf32, #tpu.memory_space<smem>>
    %472 = vector.broadcast %471 : f32 to vector<8x128xf32>
    %473 = arith.mulf %472, %432 : vector<8x128xf32>
    %474 = arith.addf %462, %473 : vector<8x128xf32>
    %cst_46 = arith.constant 0.000000e+00 : f32
    %475 = vector.broadcast %cst_46 : f32 to vector<8x1xf32>
    %476 = vector.extract_strided_slice %428 {offsets = [0, 0], sizes = [8, 127], strides = [1, 1]} : vector<8x128xf32> to vector<8x127xf32>
    %477 = tpu.concatenate %475, %476 in 1 : vector<8x1xf32>, vector<8x127xf32> -> vector<8x128xf32>
    %c85 = arith.constant 85 : index
    %478 = memref.load %arg2[%c85] : memref<124xf32, #tpu.memory_space<smem>>
    %479 = vector.broadcast %478 : f32 to vector<8x128xf32>
    %480 = arith.mulf %479, %477 : vector<8x128xf32>
    %481 = arith.addf %466, %480 : vector<8x128xf32>
    %c88 = arith.constant 88 : index
    %482 = memref.load %arg2[%c88] : memref<124xf32, #tpu.memory_space<smem>>
    %483 = vector.broadcast %482 : f32 to vector<8x128xf32>
    %484 = arith.mulf %483, %477 : vector<8x128xf32>
    %485 = arith.addf %470, %484 : vector<8x128xf32>
    %c91 = arith.constant 91 : index
    %486 = memref.load %arg2[%c91] : memref<124xf32, #tpu.memory_space<smem>>
    %487 = vector.broadcast %486 : f32 to vector<8x128xf32>
    %488 = arith.mulf %487, %477 : vector<8x128xf32>
    %489 = arith.addf %474, %488 : vector<8x128xf32>
    %cst_47 = arith.constant 0.000000e+00 : f32
    %490 = vector.broadcast %cst_47 : f32 to vector<8x1xf32>
    %491 = vector.extract_strided_slice %430 {offsets = [0, 0], sizes = [8, 127], strides = [1, 1]} : vector<8x128xf32> to vector<8x127xf32>
    %492 = tpu.concatenate %490, %491 in 1 : vector<8x1xf32>, vector<8x127xf32> -> vector<8x128xf32>
    %c94 = arith.constant 94 : index
    %493 = memref.load %arg2[%c94] : memref<124xf32, #tpu.memory_space<smem>>
    %494 = vector.broadcast %493 : f32 to vector<8x128xf32>
    %495 = arith.mulf %494, %492 : vector<8x128xf32>
    %496 = arith.addf %481, %495 : vector<8x128xf32>
    %c97 = arith.constant 97 : index
    %497 = memref.load %arg2[%c97] : memref<124xf32, #tpu.memory_space<smem>>
    %498 = vector.broadcast %497 : f32 to vector<8x128xf32>
    %499 = arith.mulf %498, %492 : vector<8x128xf32>
    %500 = arith.addf %485, %499 : vector<8x128xf32>
    %c100 = arith.constant 100 : index
    %501 = memref.load %arg2[%c100] : memref<124xf32, #tpu.memory_space<smem>>
    %502 = vector.broadcast %501 : f32 to vector<8x128xf32>
    %503 = arith.mulf %502, %492 : vector<8x128xf32>
    %504 = arith.addf %489, %503 : vector<8x128xf32>
    %cst_48 = arith.constant 0.000000e+00 : f32
    %505 = vector.broadcast %cst_48 : f32 to vector<8x1xf32>
    %506 = vector.extract_strided_slice %432 {offsets = [0, 0], sizes = [8, 127], strides = [1, 1]} : vector<8x128xf32> to vector<8x127xf32>
    %507 = tpu.concatenate %505, %506 in 1 : vector<8x1xf32>, vector<8x127xf32> -> vector<8x128xf32>
    %c103 = arith.constant 103 : index
    %508 = memref.load %arg2[%c103] : memref<124xf32, #tpu.memory_space<smem>>
    %509 = vector.broadcast %508 : f32 to vector<8x128xf32>
    %510 = arith.mulf %509, %507 : vector<8x128xf32>
    %511 = arith.addf %496, %510 : vector<8x128xf32>
    %c106 = arith.constant 106 : index
    %512 = memref.load %arg2[%c106] : memref<124xf32, #tpu.memory_space<smem>>
    %513 = vector.broadcast %512 : f32 to vector<8x128xf32>
    %514 = arith.mulf %513, %507 : vector<8x128xf32>
    %515 = arith.addf %500, %514 : vector<8x128xf32>
    %c109 = arith.constant 109 : index
    %516 = memref.load %arg2[%c109] : memref<124xf32, #tpu.memory_space<smem>>
    %517 = vector.broadcast %516 : f32 to vector<8x128xf32>
    %518 = arith.mulf %517, %507 : vector<8x128xf32>
    %519 = arith.addf %504, %518 : vector<8x128xf32>
    %cst_49 = arith.constant 0.000000e+00 : f32
    %520 = vector.broadcast %cst_49 : f32 to vector<8x2xf32>
    %521 = vector.extract_strided_slice %428 {offsets = [0, 0], sizes = [8, 126], strides = [1, 1]} : vector<8x128xf32> to vector<8x126xf32>
    %522 = tpu.concatenate %520, %521 in 1 : vector<8x2xf32>, vector<8x126xf32> -> vector<8x128xf32>
    %c86 = arith.constant 86 : index
    %523 = memref.load %arg2[%c86] : memref<124xf32, #tpu.memory_space<smem>>
    %524 = vector.broadcast %523 : f32 to vector<8x128xf32>
    %525 = arith.mulf %524, %522 : vector<8x128xf32>
    %526 = arith.addf %511, %525 : vector<8x128xf32>
    %c89 = arith.constant 89 : index
    %527 = memref.load %arg2[%c89] : memref<124xf32, #tpu.memory_space<smem>>
    %528 = vector.broadcast %527 : f32 to vector<8x128xf32>
    %529 = arith.mulf %528, %522 : vector<8x128xf32>
    %530 = arith.addf %515, %529 : vector<8x128xf32>
    %c92 = arith.constant 92 : index
    %531 = memref.load %arg2[%c92] : memref<124xf32, #tpu.memory_space<smem>>
    %532 = vector.broadcast %531 : f32 to vector<8x128xf32>
    %533 = arith.mulf %532, %522 : vector<8x128xf32>
    %534 = arith.addf %519, %533 : vector<8x128xf32>
    %cst_50 = arith.constant 0.000000e+00 : f32
    %535 = vector.broadcast %cst_50 : f32 to vector<8x2xf32>
    %536 = vector.extract_strided_slice %430 {offsets = [0, 0], sizes = [8, 126], strides = [1, 1]} : vector<8x128xf32> to vector<8x126xf32>
    %537 = tpu.concatenate %535, %536 in 1 : vector<8x2xf32>, vector<8x126xf32> -> vector<8x128xf32>
    %c95 = arith.constant 95 : index
    %538 = memref.load %arg2[%c95] : memref<124xf32, #tpu.memory_space<smem>>
    %539 = vector.broadcast %538 : f32 to vector<8x128xf32>
    %540 = arith.mulf %539, %537 : vector<8x128xf32>
    %541 = arith.addf %526, %540 : vector<8x128xf32>
    %c98 = arith.constant 98 : index
    %542 = memref.load %arg2[%c98] : memref<124xf32, #tpu.memory_space<smem>>
    %543 = vector.broadcast %542 : f32 to vector<8x128xf32>
    %544 = arith.mulf %543, %537 : vector<8x128xf32>
    %545 = arith.addf %530, %544 : vector<8x128xf32>
    %c101 = arith.constant 101 : index
    %546 = memref.load %arg2[%c101] : memref<124xf32, #tpu.memory_space<smem>>
    %547 = vector.broadcast %546 : f32 to vector<8x128xf32>
    %548 = arith.mulf %547, %537 : vector<8x128xf32>
    %549 = arith.addf %534, %548 : vector<8x128xf32>
    %cst_51 = arith.constant 0.000000e+00 : f32
    %550 = vector.broadcast %cst_51 : f32 to vector<8x2xf32>
    %551 = vector.extract_strided_slice %432 {offsets = [0, 0], sizes = [8, 126], strides = [1, 1]} : vector<8x128xf32> to vector<8x126xf32>
    %552 = tpu.concatenate %550, %551 in 1 : vector<8x2xf32>, vector<8x126xf32> -> vector<8x128xf32>
    %c104 = arith.constant 104 : index
    %553 = memref.load %arg2[%c104] : memref<124xf32, #tpu.memory_space<smem>>
    %554 = vector.broadcast %553 : f32 to vector<8x128xf32>
    %555 = arith.mulf %554, %552 : vector<8x128xf32>
    %556 = arith.addf %541, %555 : vector<8x128xf32>
    %c107 = arith.constant 107 : index
    %557 = memref.load %arg2[%c107] : memref<124xf32, #tpu.memory_space<smem>>
    %558 = vector.broadcast %557 : f32 to vector<8x128xf32>
    %559 = arith.mulf %558, %552 : vector<8x128xf32>
    %560 = arith.addf %545, %559 : vector<8x128xf32>
    %c110 = arith.constant 110 : index
    %561 = memref.load %arg2[%c110] : memref<124xf32, #tpu.memory_space<smem>>
    %562 = vector.broadcast %561 : f32 to vector<8x128xf32>
    %563 = arith.mulf %562, %552 : vector<8x128xf32>
    %564 = arith.addf %549, %563 : vector<8x128xf32>
    %cst_52 = arith.constant 0.000000e+00 : f32
    %565 = vector.broadcast %cst_52 : f32 to vector<8x128xf32>
    %566 = arith.cmpf oge, %556, %565 : vector<8x128xf32>
    %cst_53 = arith.constant 0.00999999977 : f32
    %567 = vector.broadcast %cst_53 : f32 to vector<8x128xf32>
    %568 = arith.mulf %567, %556 : vector<8x128xf32>
    %569 = arith.select %566, %556, %568 : vector<8x128xi1>, vector<8x128xf32>
    %cst_54 = arith.constant 0.000000e+00 : f32
    %570 = vector.broadcast %cst_54 : f32 to vector<8x128xf32>
    %571 = arith.cmpf oge, %560, %570 : vector<8x128xf32>
    %cst_55 = arith.constant 0.00999999977 : f32
    %572 = vector.broadcast %cst_55 : f32 to vector<8x128xf32>
    %573 = arith.mulf %572, %560 : vector<8x128xf32>
    %574 = arith.select %571, %560, %573 : vector<8x128xi1>, vector<8x128xf32>
    %cst_56 = arith.constant 0.000000e+00 : f32
    %575 = vector.broadcast %cst_56 : f32 to vector<8x128xf32>
    %576 = arith.cmpf oge, %564, %575 : vector<8x128xf32>
    %cst_57 = arith.constant 0.00999999977 : f32
    %577 = vector.broadcast %cst_57 : f32 to vector<8x128xf32>
    %578 = arith.mulf %577, %564 : vector<8x128xf32>
    %579 = arith.select %576, %564, %578 : vector<8x128xi1>, vector<8x128xf32>
    %c14_i32 = arith.constant 14 : i32
    %580 = vector.broadcast %c14_i32 : i32 to vector<8x128xi32>
    %581 = arith.cmpi slt, %314, %580 : vector<8x128xi32>
    %cst_58 = arith.constant 0.000000e+00 : f32
    %582 = vector.broadcast %cst_58 : f32 to vector<8x128xf32>
    %583 = arith.select %581, %569, %582 : vector<8x128xi1>, vector<8x128xf32>
    %cst_59 = arith.constant 0.000000e+00 : f32
    %584 = vector.broadcast %cst_59 : f32 to vector<8x128xf32>
    %585 = arith.select %581, %574, %584 : vector<8x128xi1>, vector<8x128xf32>
    %cst_60 = arith.constant 0.000000e+00 : f32
    %586 = vector.broadcast %cst_60 : f32 to vector<8x128xf32>
    %587 = arith.select %581, %579, %586 : vector<8x128xi1>, vector<8x128xf32>
    %c123 = arith.constant 123 : index
    %588 = memref.load %arg2[%c123] : memref<124xf32, #tpu.memory_space<smem>>
    %589 = vector.broadcast %588 : f32 to vector<8x128xf32>
    %c114 = arith.constant 114 : index
    %590 = memref.load %arg2[%c114] : memref<124xf32, #tpu.memory_space<smem>>
    %591 = vector.broadcast %590 : f32 to vector<8x128xf32>
    %592 = arith.mulf %591, %583 : vector<8x128xf32>
    %593 = arith.addf %589, %592 : vector<8x128xf32>
    %c117 = arith.constant 117 : index
    %594 = memref.load %arg2[%c117] : memref<124xf32, #tpu.memory_space<smem>>
    %595 = vector.broadcast %594 : f32 to vector<8x128xf32>
    %596 = arith.mulf %595, %585 : vector<8x128xf32>
    %597 = arith.addf %593, %596 : vector<8x128xf32>
    %c120 = arith.constant 120 : index
    %598 = memref.load %arg2[%c120] : memref<124xf32, #tpu.memory_space<smem>>
    %599 = vector.broadcast %598 : f32 to vector<8x128xf32>
    %600 = arith.mulf %599, %587 : vector<8x128xf32>
    %601 = arith.addf %597, %600 : vector<8x128xf32>
    %cst_61 = arith.constant 0.000000e+00 : f32
    %602 = vector.broadcast %cst_61 : f32 to vector<8x1xf32>
    %603 = vector.extract_strided_slice %583 {offsets = [0, 0], sizes = [8, 127], strides = [1, 1]} : vector<8x128xf32> to vector<8x127xf32>
    %604 = tpu.concatenate %602, %603 in 1 : vector<8x1xf32>, vector<8x127xf32> -> vector<8x128xf32>
    %c115 = arith.constant 115 : index
    %605 = memref.load %arg2[%c115] : memref<124xf32, #tpu.memory_space<smem>>
    %606 = vector.broadcast %605 : f32 to vector<8x128xf32>
    %607 = arith.mulf %606, %604 : vector<8x128xf32>
    %608 = arith.addf %601, %607 : vector<8x128xf32>
    %cst_62 = arith.constant 0.000000e+00 : f32
    %609 = vector.broadcast %cst_62 : f32 to vector<8x1xf32>
    %610 = vector.extract_strided_slice %585 {offsets = [0, 0], sizes = [8, 127], strides = [1, 1]} : vector<8x128xf32> to vector<8x127xf32>
    %611 = tpu.concatenate %609, %610 in 1 : vector<8x1xf32>, vector<8x127xf32> -> vector<8x128xf32>
    %c118 = arith.constant 118 : index
    %612 = memref.load %arg2[%c118] : memref<124xf32, #tpu.memory_space<smem>>
    %613 = vector.broadcast %612 : f32 to vector<8x128xf32>
    %614 = arith.mulf %613, %611 : vector<8x128xf32>
    %615 = arith.addf %608, %614 : vector<8x128xf32>
    %cst_63 = arith.constant 0.000000e+00 : f32
    %616 = vector.broadcast %cst_63 : f32 to vector<8x1xf32>
    %617 = vector.extract_strided_slice %587 {offsets = [0, 0], sizes = [8, 127], strides = [1, 1]} : vector<8x128xf32> to vector<8x127xf32>
    %618 = tpu.concatenate %616, %617 in 1 : vector<8x1xf32>, vector<8x127xf32> -> vector<8x128xf32>
    %c121 = arith.constant 121 : index
    %619 = memref.load %arg2[%c121] : memref<124xf32, #tpu.memory_space<smem>>
    %620 = vector.broadcast %619 : f32 to vector<8x128xf32>
    %621 = arith.mulf %620, %618 : vector<8x128xf32>
    %622 = arith.addf %615, %621 : vector<8x128xf32>
    %cst_64 = arith.constant 0.000000e+00 : f32
    %623 = vector.broadcast %cst_64 : f32 to vector<8x2xf32>
    %624 = vector.extract_strided_slice %583 {offsets = [0, 0], sizes = [8, 126], strides = [1, 1]} : vector<8x128xf32> to vector<8x126xf32>
    %625 = tpu.concatenate %623, %624 in 1 : vector<8x2xf32>, vector<8x126xf32> -> vector<8x128xf32>
    %c116 = arith.constant 116 : index
    %626 = memref.load %arg2[%c116] : memref<124xf32, #tpu.memory_space<smem>>
    %627 = vector.broadcast %626 : f32 to vector<8x128xf32>
    %628 = arith.mulf %627, %625 : vector<8x128xf32>
    %629 = arith.addf %622, %628 : vector<8x128xf32>
    %cst_65 = arith.constant 0.000000e+00 : f32
    %630 = vector.broadcast %cst_65 : f32 to vector<8x2xf32>
    %631 = vector.extract_strided_slice %585 {offsets = [0, 0], sizes = [8, 126], strides = [1, 1]} : vector<8x128xf32> to vector<8x126xf32>
    %632 = tpu.concatenate %630, %631 in 1 : vector<8x2xf32>, vector<8x126xf32> -> vector<8x128xf32>
    %c119 = arith.constant 119 : index
    %633 = memref.load %arg2[%c119] : memref<124xf32, #tpu.memory_space<smem>>
    %634 = vector.broadcast %633 : f32 to vector<8x128xf32>
    %635 = arith.mulf %634, %632 : vector<8x128xf32>
    %636 = arith.addf %629, %635 : vector<8x128xf32>
    %cst_66 = arith.constant 0.000000e+00 : f32
    %637 = vector.broadcast %cst_66 : f32 to vector<8x2xf32>
    %638 = vector.extract_strided_slice %587 {offsets = [0, 0], sizes = [8, 126], strides = [1, 1]} : vector<8x128xf32> to vector<8x126xf32>
    %639 = tpu.concatenate %637, %638 in 1 : vector<8x2xf32>, vector<8x126xf32> -> vector<8x128xf32>
    %c122 = arith.constant 122 : index
    %640 = memref.load %arg2[%c122] : memref<124xf32, #tpu.memory_space<smem>>
    %641 = vector.broadcast %640 : f32 to vector<8x128xf32>
    %642 = arith.mulf %641, %639 : vector<8x128xf32>
    %643 = arith.addf %636, %642 : vector<8x128xf32>
    %cst_67 = arith.constant 0.000000e+00 : f32
    %644 = vector.broadcast %cst_67 : f32 to vector<8x128xf32>
    %645 = arith.cmpf oge, %643, %644 : vector<8x128xf32>
    %cst_68 = arith.constant 0.00999999977 : f32
    %646 = vector.broadcast %cst_68 : f32 to vector<8x128xf32>
    %647 = arith.mulf %646, %643 : vector<8x128xf32>
    %648 = arith.select %645, %643, %647 : vector<8x128xi1>, vector<8x128xf32>
    %649 = vector.shape_cast %648 : vector<8x128xf32> to vector<8x1x128xf32>
    %c0_69 = arith.constant 0 : index
    %c0_70 = arith.constant 0 : index
    %c0_71 = arith.constant 0 : index
    %650 = vector.load %arg3[%c0_69, %c0_70, %c0_71] : memref<8x1x128xf32, #tpu.memory_space<vmem>>, vector<8x1x128xf32>
    tpu.vector_store %arg3[%c0_69, %c0_70, %c0_71], %649 {strides = array<i32>} : memref<8x1x128xf32, #tpu.memory_space<vmem>>, vector<8x1x128xf32>,
    return
  }
  func.func @transform_0(%arg0: i32) -> (i32, i32, i32) {
    %c0_i32 = arith.constant 0 : i32
    %c0_i32_0 = arith.constant 0 : i32
    %c0_i32_1 = arith.constant 0 : i32
    return %arg0, %c0_i32, %c0_i32_0 : i32, i32, i32
  }
  func.func @transform_1(%arg0: i32) -> i32 {
    %c0_i32 = arith.constant 0 : i32
    %c0_i32_0 = arith.constant 0 : i32
    return %c0_i32 : i32
  }
  func.func @transform_2(%arg0: i32) -> (i32, i32, i32) {
    %c0_i32 = arith.constant 0 : i32
    %c0_i32_0 = arith.constant 0 : i32
    %c0_i32_1 = arith.constant 0 : i32
    return %arg0, %c0_i32, %c0_i32_0 : i32, i32, i32
  }
}

</mosaic_0001>

<llo_original>
// kernel: tpu_custom_call.1
$region0: #{tpu_custom_call.1}
  #allocation0 [shape = 'u32[]', space=smem, size = 0x4, offset = 0x4, fixed_abs, tag = 'smem constant byte address 0x4 - core index']
  #allocation1 [shape = 'u32[72,128]{1,0:T(1,128)}', space=vmem, size = 0x9000, scoped, tag = 'internal scratch']
  %s0 = inlined_call_operand.hbm [shape: f32[8,1,128], index: 0, kind: input, shape index: {}]
  %s1 = inlined_call_operand.hbm [shape: f32[124], index: 1, kind: input, shape index: {}]
  %s2 = inlined_call_operand.hbm [shape: f32[8,1,128], index: 2, kind: output, shape index: {}]
  %s3 = sld [smem:[#allocation0]]
  $region26: #{tpu_custom_call.1} parent=0
    _
  %s5 = ssub.s32 1, %s3
  %s6 = scalar_select 0, %s5, %s3
  $region1: #{tpu_custom_call.1} parent=0
    #allocation2 [shape = 'u8[4096]{0}', space=vmem, size = 0x1000, scoped, tag = 'input window, operand 0, single buffered']
    #allocation3 [shape = 's32[1]{0}', space=sflag, size = 0x4, scoped, tag = 'scoped memory for tpu_custom_call.1']
    #allocation4 [shape = 's32[1]{0}', space=sflag, size = 0x4, scoped, tag = 'scoped memory for tpu_custom_call.1']
    #allocation5 [shape = 's32[1]{0}', space=sflag, size = 0x4, scoped, tag = 'scoped memory for tpu_custom_call.1']
    #allocation6 [shape = 'u8[512]{0}', space=smem, size = 0x200, scoped, tag = 'input window, operand 1, single buffered']
    #allocation7 [shape = 'u8[4096]{0}', space=vmem, size = 0x1000, scoped, tag = 'output window, operand 0, single buffered']
    %7 = vsyncpa [#allocation3], 0
    %8 = vsyncpa [#allocation5], 0
    %9 = vsyncpa [#allocation4], 0
    // Predicated region
    $region2: #{tpu_custom_call.1} parent=1 // pred_check
      _
    $region3: #{tpu_custom_call.1} parent=1 // pred_check_branch
      %11 = sbr.rel (0) target = $region5
    $region4: #{tpu_custom_call.1} parent=1 // pred_region
      %13 = vsyncadd [#allocation3], 0
      %s14 = sshll.u32 %s0, 4
      %s15 = int_to_ptr.hbm [resolvable:$true] %s14
      %s16 = sshll.u32 [#allocation2], 4
      %s17 = int_to_ptr.vmem [resolvable:$true] %s16
      %22 = dma.hbm_to_vmem [thread:$0]  %s15, 128, %s17, [#allocation3], 16, 16, 1
    $region5: #{tpu_custom_call.1} parent=1 // pred_fallthru
      _
    // Predicated region
    $region6: #{tpu_custom_call.1} parent=1 // pred_check
      _
    $region7: #{tpu_custom_call.1} parent=1 // pred_check_branch
      %24 = sbr.rel (0) target = $region9
    $region8: #{tpu_custom_call.1} parent=1 // pred_region
      %26 = vsyncadd [#allocation5], 0
      %s28 = sshll.u32 %s1, 4
      %s29 = int_to_ptr.hbm [resolvable:$true] %s28
      %31 = dma.hbm_to_smem %s29, 16, [#allocation6], [#allocation5]
    $region9: #{tpu_custom_call.1} parent=1 // pred_fallthru
      _
    // Predicated region
    $region10: #{tpu_custom_call.1} parent=1 // pred_check
      _
    $region11: #{tpu_custom_call.1} parent=1 // pred_check_branch
      %33 = sbr.rel (0) target = $region13
    $region12: #{tpu_custom_call.1} parent=1 // pred_region
      %35 = dma.done [#allocation3], 128
    $region13: #{tpu_custom_call.1} parent=1 // pred_fallthru
      _
    // Predicated region
    $region14: #{tpu_custom_call.1} parent=1 // pred_check
      _
    $region15: #{tpu_custom_call.1} parent=1 // pred_check_branch
      %37 = sbr.rel (0) target = $region17
    $region16: #{tpu_custom_call.1} parent=1 // pred_region
      %39 = dma.done [#allocation5], 16
    $region17: #{tpu_custom_call.1} parent=1 // pred_fallthru
      _
    %40 = sfence
    %v41 = vld [vmem:[#allocation2] sm:$0x1]
    %v42 = vld [vmem:[#allocation2 + $0x1] sm:$0x1]
    %v43 = vld [vmem:[#allocation2 + $0x2] sm:$0x1]
    %v44 = vld [vmem:[#allocation2 + $0x3] sm:$0x1]
    %v45 = vld [vmem:[#allocation2 + $0x4] sm:$0x1]
    %v46 = vld [vmem:[#allocation2 + $0x5] sm:$0x1]
    %v47 = vld [vmem:[#allocation2 + $0x6] sm:$0x1]
    %v48 = vld [vmem:[#allocation2 + $0x7] sm:$0x1]
    %s49 = sld [smem:[#allocation6 + $0x9]]
    %v50 = vstv %s49
    %s51 = sld [smem:[#allocation6 + $0xa]]
    %v52 = vstv %s51
    %s53 = sld [smem:[#allocation6 + $0xb]]
    %v54 = vstv %s53
    %s55 = sld [smem:[#allocation6]]
    %v56 = vstv %s55
    %v57 = vmul.f32 %v56, %v41
    %v58 = vmul.f32 %v56, %v42
    %v59 = vmul.f32 %v56, %v43
    %v60 = vmul.f32 %v56, %v44
    %v61 = vmul.f32 %v56, %v45
    %v62 = vmul.f32 %v56, %v46
    %v63 = vmul.f32 %v56, %v47
    %v64 = vmul.f32 %v56, %v48
    %v65 = vadd.f32 %v50, %v57
    %v66 = vadd.f32 %v50, %v58
    %v67 = vadd.f32 %v50, %v59
    %v68 = vadd.f32 %v50, %v60
    %v69 = vadd.f32 %v50, %v61
    %v70 = vadd.f32 %v50, %v62
    %v71 = vadd.f32 %v50, %v63
    %v72 = vadd.f32 %v50, %v64
    %s73 = sld [smem:[#allocation6 + $0x3]]
    %v74 = vstv %s73
    %v75 = vmul.f32 %v74, %v41
    %v76 = vmul.f32 %v74, %v42
    %v77 = vmul.f32 %v74, %v43
    %v78 = vmul.f32 %v74, %v44
    %v79 = vmul.f32 %v74, %v45
    %v80 = vmul.f32 %v74, %v46
    %v81 = vmul.f32 %v74, %v47
    %v82 = vmul.f32 %v74, %v48
    %v83 = vadd.f32 %v52, %v75
    %v84 = vadd.f32 %v52, %v76
    %v85 = vadd.f32 %v52, %v77
    %v86 = vadd.f32 %v52, %v78
    %v87 = vadd.f32 %v52, %v79
    %v88 = vadd.f32 %v52, %v80
    %v89 = vadd.f32 %v52, %v81
    %v90 = vadd.f32 %v52, %v82
    %s91 = sld [smem:[#allocation6 + $0x6]]
    %v92 = vstv %s91
    %v93 = vmul.f32 %v92, %v41
    %v94 = vmul.f32 %v92, %v42
    %v95 = vmul.f32 %v92, %v43
    %v96 = vmul.f32 %v92, %v44
    %v97 = vmul.f32 %v92, %v45
    %v98 = vmul.f32 %v92, %v46
    %v99 = vmul.f32 %v92, %v47
    %v100 = vmul.f32 %v92, %v48
    %v101 = vadd.f32 %v54, %v93
    %v102 = vadd.f32 %v54, %v94
    %v103 = vadd.f32 %v54, %v95
    %v104 = vadd.f32 %v54, %v96
    %v105 = vadd.f32 %v54, %v97
    %v106 = vadd.f32 %v54, %v98
    %v107 = vadd.f32 %v54, %v99
    %v108 = vadd.f32 %v54, %v100
    %117 = vst [vmem:[#allocation1] ss:$9 sm:$0xff] %v41
    %s118 = scalar_lea.vmem [#allocation1], 1
    %119 = vst [vmem:[%s118] ss:$9 sm:$0xff] %v42
    %s120 = scalar_lea.vmem [#allocation1], 2
    %121 = vst [vmem:[%s120] ss:$9 sm:$0xff] %v43
    %s122 = scalar_lea.vmem [#allocation1], 3
    %123 = vst [vmem:[%s122] ss:$9 sm:$0xff] %v44
    %s124 = scalar_lea.vmem [#allocation1], 4
    %125 = vst [vmem:[%s124] ss:$9 sm:$0xff] %v45
    %s126 = scalar_lea.vmem [#allocation1], 5
    %127 = vst [vmem:[%s126] ss:$9 sm:$0xff] %v46
    %s128 = scalar_lea.vmem [#allocation1], 6
    %129 = vst [vmem:[%s128] ss:$9 sm:$0xff] %v47
    %s130 = scalar_lea.vmem [#allocation1], 7
    %131 = vst [vmem:[%s130] ss:$9 sm:$0xff] %v48
    %v132 = vld [vmem:[#allocation1] sm:$0xff]
    %133 = vrot.lane.b32.xlu0 %v132, 127
    %v134 = vpop.permute.xlu0 %133
    %vm136 = vcmask 1039360
    %v137 = vsel %vm136, %v134, 0.0
    %s138 = sld [smem:[#allocation6 + $0x1]]
    %v139 = vstv %s138
    %v140 = vmul.f32 %v139, %v137
    %v142 = vrot.slane %v140, 1
    %v143 = vrot.slane %v140, 2
    %v144 = vrot.slane %v140, 3
    %v145 = vrot.slane %v140, 4
    %v146 = vrot.slane %v140, 5
    %v147 = vrot.slane %v140, 6
    %v148 = vrot.slane %v140, 7
    %v156 = vadd.f32 %v65, %v140
    %v157 = vadd.f32 %v66, %v142
    %v158 = vadd.f32 %v67, %v143
    %v159 = vadd.f32 %v68, %v144
    %v160 = vadd.f32 %v69, %v145
    %v161 = vadd.f32 %v70, %v146
    %v162 = vadd.f32 %v71, %v147
    %v163 = vadd.f32 %v72, %v148
    %s164 = sld [smem:[#allocation6 + $0x4]]
    %v165 = vstv %s164
    %v166 = vmul.f32 %v165, %v137
    %v168 = vrot.slane %v166, 1
    %v169 = vrot.slane %v166, 2
    %v170 = vrot.slane %v166, 3
    %v171 = vrot.slane %v166, 4
    %v172 = vrot.slane %v166, 5
    %v173 = vrot.slane %v166, 6
    %v174 = vrot.slane %v166, 7
    %v182 = vadd.f32 %v83, %v166
    %v183 = vadd.f32 %v84, %v168
    %v184 = vadd.f32 %v85, %v169
    %v185 = vadd.f32 %v86, %v170
    %v186 = vadd.f32 %v87, %v171
    %v187 = vadd.f32 %v88, %v172
    %v188 = vadd.f32 %v89, %v173
    %v189 = vadd.f32 %v90, %v174
    %s190 = sld [smem:[#allocation6 + $0x7]]
    %v191 = vstv %s190
    %v192 = vmul.f32 %v191, %v137
    %v194 = vrot.slane %v192, 1
    %v195 = vrot.slane %v192, 2
    %v196 = vrot.slane %v192, 3
    %v197 = vrot.slane %v192, 4
    %v198 = vrot.slane %v192, 5
    %v199 = vrot.slane %v192, 6
    %v200 = vrot.slane %v192, 7
    %v208 = vadd.f32 %v101, %v192
    %v209 = vadd.f32 %v102, %v194
    %v210 = vadd.f32 %v103, %v195
    %v211 = vadd.f32 %v104, %v196
    %v212 = vadd.f32 %v105, %v197
    %v213 = vadd.f32 %v106, %v198
    %v214 = vadd.f32 %v107, %v199
    %v215 = vadd.f32 %v108, %v200
    %216 = vst [vmem:[#allocation1] ss:$9 sm:$0xff] %v41
    %s217 = scalar_lea.vmem [#allocation1], 1
    %218 = vst [vmem:[%s217] ss:$9 sm:$0xff] %v42
    %s219 = scalar_lea.vmem [#allocation1], 2
    %220 = vst [vmem:[%s219] ss:$9 sm:$0xff] %v43
    %s221 = scalar_lea.vmem [#allocation1], 3
    %222 = vst [vmem:[%s221] ss:$9 sm:$0xff] %v44
    %s223 = scalar_lea.vmem [#allocation1], 4
    %224 = vst [vmem:[%s223] ss:$9 sm:$0xff] %v45
    %s225 = scalar_lea.vmem [#allocation1], 5
    %226 = vst [vmem:[%s225] ss:$9 sm:$0xff] %v46
    %s227 = scalar_lea.vmem [#allocation1], 6
    %228 = vst [vmem:[%s227] ss:$9 sm:$0xff] %v47
    %s229 = scalar_lea.vmem [#allocation1], 7
    %230 = vst [vmem:[%s229] ss:$9 sm:$0xff] %v48
    %v231 = vld [vmem:[#allocation1] sm:$0xff]
    %232 = vrot.lane.b32.xlu0 %v231, 126
    %v233 = vpop.permute.xlu0 %232
    %vm235 = vcmask 1031168
    %v236 = vsel %vm235, %v233, 0.0
    %s237 = sld [smem:[#allocation6 + $0x2]]
    %v238 = vstv %s237
    %v239 = vmul.f32 %v238, %v236
    %v241 = vrot.slane %v239, 1
    %v242 = vrot.slane %v239, 2
    %v243 = vrot.slane %v239, 3
    %v244 = vrot.slane %v239, 4
    %v245 = vrot.slane %v239, 5
    %v246 = vrot.slane %v239, 6
    %v247 = vrot.slane %v239, 7
    %v255 = vadd.f32 %v156, %v239
    %v256 = vadd.f32 %v157, %v241
    %v257 = vadd.f32 %v158, %v242
    %v258 = vadd.f32 %v159, %v243
    %v259 = vadd.f32 %v160, %v244
    %v260 = vadd.f32 %v161, %v245
    %v261 = vadd.f32 %v162, %v246
    %v262 = vadd.f32 %v163, %v247
    %s263 = sld [smem:[#allocation6 + $0x5]]
    %v264 = vstv %s263
    %v265 = vmul.f32 %v264, %v236
    %v267 = vrot.slane %v265, 1
    %v268 = vrot.slane %v265, 2
    %v269 = vrot.slane %v265, 3
    %v270 = vrot.slane %v265, 4
    %v271 = vrot.slane %v265, 5
    %v272 = vrot.slane %v265, 6
    %v273 = vrot.slane %v265, 7
    %v281 = vadd.f32 %v182, %v265
    %v282 = vadd.f32 %v183, %v267
    %v283 = vadd.f32 %v184, %v268
    %v284 = vadd.f32 %v185, %v269
    %v285 = vadd.f32 %v186, %v270
    %v286 = vadd.f32 %v187, %v271
    %v287 = vadd.f32 %v188, %v272
    %v288 = vadd.f32 %v189, %v273
    %s289 = sld [smem:[#allocation6 + $0x8]]
    %v290 = vstv %s289
    %v291 = vmul.f32 %v290, %v236
    %v293 = vrot.slane %v291, 1
    %v294 = vrot.slane %v291, 2
    %v295 = vrot.slane %v291, 3
    %v296 = vrot.slane %v291, 4
    %v297 = vrot.slane %v291, 5
    %v298 = vrot.slane %v291, 6
    %v299 = vrot.slane %v291, 7
    %v307 = vadd.f32 %v208, %v291
    %v308 = vadd.f32 %v209, %v293
    %v309 = vadd.f32 %v210, %v294
    %v310 = vadd.f32 %v211, %v295
    %v311 = vadd.f32 %v212, %v296
    %v312 = vadd.f32 %v213, %v297
    %v313 = vadd.f32 %v214, %v298
    %v314 = vadd.f32 %v215, %v299
    %vm315 = vcmp.ge.f32.partialorder %v255, 0.0
    %vm316 = vcmp.ge.f32.partialorder %v256, 0.0
    %vm317 = vcmp.ge.f32.partialorder %v257, 0.0
    %vm318 = vcmp.ge.f32.partialorder %v258, 0.0
    %vm319 = vcmp.ge.f32.partialorder %v259, 0.0
    %vm320 = vcmp.ge.f32.partialorder %v260, 0.0
    %vm321 = vcmp.ge.f32.partialorder %v261, 0.0
    %vm322 = vcmp.ge.f32.partialorder %v262, 0.0
    %v323 = vmul.f32 %v255, 0.01
    %v324 = vmul.f32 %v256, 0.01
    %v325 = vmul.f32 %v257, 0.01
    %v326 = vmul.f32 %v258, 0.01
    %v327 = vmul.f32 %v259, 0.01
    %v328 = vmul.f32 %v260, 0.01
    %v329 = vmul.f32 %v261, 0.01
    %v330 = vmul.f32 %v262, 0.01
    %v331 = vsel %vm315, %v255, %v323
    %v332 = vsel %vm316, %v256, %v324
    %v333 = vsel %vm317, %v257, %v325
    %v334 = vsel %vm318, %v258, %v326
    %v335 = vsel %vm319, %v259, %v327
    %v336 = vsel %vm320, %v260, %v328
    %v337 = vsel %vm321, %v261, %v329
    %v338 = vsel %vm322, %v262, %v330
    %vm339 = vcmp.ge.f32.partialorder %v281, 0.0
    %vm340 = vcmp.ge.f32.partialorder %v282, 0.0
    %vm341 = vcmp.ge.f32.partialorder %v283, 0.0
    %vm342 = vcmp.ge.f32.partialorder %v284, 0.0
    %vm343 = vcmp.ge.f32.partialorder %v285, 0.0
    %vm344 = vcmp.ge.f32.partialorder %v286, 0.0
    %vm345 = vcmp.ge.f32.partialorder %v287, 0.0
    %vm346 = vcmp.ge.f32.partialorder %v288, 0.0
    %v347 = vmul.f32 %v281, 0.01
    %v348 = vmul.f32 %v282, 0.01
    %v349 = vmul.f32 %v283, 0.01
    %v350 = vmul.f32 %v284, 0.01
    %v351 = vmul.f32 %v285, 0.01
    %v352 = vmul.f32 %v286, 0.01
    %v353 = vmul.f32 %v287, 0.01
    %v354 = vmul.f32 %v288, 0.01
    %v355 = vsel %vm339, %v281, %v347
    %v356 = vsel %vm340, %v282, %v348
    %v357 = vsel %vm341, %v283, %v349
    %v358 = vsel %vm342, %v284, %v350
    %v359 = vsel %vm343, %v285, %v351
    %v360 = vsel %vm344, %v286, %v352
    %v361 = vsel %vm345, %v287, %v353
    %v362 = vsel %vm346, %v288, %v354
    %vm363 = vcmp.ge.f32.partialorder %v307, 0.0
    %vm364 = vcmp.ge.f32.partialorder %v308, 0.0
    %vm365 = vcmp.ge.f32.partialorder %v309, 0.0
    %vm366 = vcmp.ge.f32.partialorder %v310, 0.0
    %vm367 = vcmp.ge.f32.partialorder %v311, 0.0
    %vm368 = vcmp.ge.f32.partialorder %v312, 0.0
    %vm369 = vcmp.ge.f32.partialorder %v313, 0.0
    %vm370 = vcmp.ge.f32.partialorder %v314, 0.0
    %v371 = vmul.f32 %v307, 0.01
    %v372 = vmul.f32 %v308, 0.01
    %v373 = vmul.f32 %v309, 0.01
    %v374 = vmul.f32 %v310, 0.01
    %v375 = vmul.f32 %v311, 0.01
    %v376 = vmul.f32 %v312, 0.01
    %v377 = vmul.f32 %v313, 0.01
    %v378 = vmul.f32 %v314, 0.01
    %v379 = vsel %vm363, %v307, %v371
    %v380 = vsel %vm364, %v308, %v372
    %v381 = vsel %vm365, %v309, %v373
    %v382 = vsel %vm366, %v310, %v374
    %v383 = vsel %vm367, %v311, %v375
    %v384 = vsel %vm368, %v312, %v376
    %v385 = vsel %vm369, %v313, %v377
    %v386 = vsel %vm370, %v314, %v378
    %s387 = sld [smem:[#allocation6 + $0x27]]
    %v388 = vstv %s387
    %s389 = sld [smem:[#allocation6 + $0x28]]
    %v390 = vstv %s389
    %s391 = sld [smem:[#allocation6 + $0x29]]
    %v392 = vstv %s391
    %s393 = sld [smem:[#allocation6 + $0xc]]
    %v394 = vstv %s393
    %v395 = vmul.f32 %v394, %v331
    %v396 = vmul.f32 %v394, %v332
    %v397 = vmul.f32 %v394, %v333
    %v398 = vmul.f32 %v394, %v334
    %v399 = vmul.f32 %v394, %v335
    %v400 = vmul.f32 %v394, %v336
    %v401 = vmul.f32 %v394, %v337
    %v402 = vmul.f32 %v394, %v338
    %v403 = vadd.f32 %v388, %v395
    %v404 = vadd.f32 %v388, %v396
    %v405 = vadd.f32 %v388, %v397
    %v406 = vadd.f32 %v388, %v398
    %v407 = vadd.f32 %v388, %v399
    %v408 = vadd.f32 %v388, %v400
    %v409 = vadd.f32 %v388, %v401
    %v410 = vadd.f32 %v388, %v402
    %s411 = sld [smem:[#allocation6 + $0x15]]
    %v412 = vstv %s411
    %v413 = vmul.f32 %v412, %v331
    %v414 = vmul.f32 %v412, %v332
    %v415 = vmul.f32 %v412, %v333
    %v416 = vmul.f32 %v412, %v334
    %v417 = vmul.f32 %v412, %v335
    %v418 = vmul.f32 %v412, %v336
    %v419 = vmul.f32 %v412, %v337
    %v420 = vmul.f32 %v412, %v338
    %v421 = vadd.f32 %v390, %v413
    %v422 = vadd.f32 %v390, %v414
    %v423 = vadd.f32 %v390, %v415
    %v424 = vadd.f32 %v390, %v416
    %v425 = vadd.f32 %v390, %v417
    %v426 = vadd.f32 %v390, %v418
    %v427 = vadd.f32 %v390, %v419
    %v428 = vadd.f32 %v390, %v420
    %s429 = sld [smem:[#allocation6 + $0x1e]]
    %v430 = vstv %s429
    %v431 = vmul.f32 %v430, %v331
    %v432 = vmul.f32 %v430, %v332
    %v433 = vmul.f32 %v430, %v333
    %v434 = vmul.f32 %v430, %v334
    %v435 = vmul.f32 %v430, %v335
    %v436 = vmul.f32 %v430, %v336
    %v437 = vmul.f32 %v430, %v337
    %v438 = vmul.f32 %v430, %v338
    %v439 = vadd.f32 %v392, %v431
    %v440 = vadd.f32 %v392, %v432
    %v441 = vadd.f32 %v392, %v433
    %v442 = vadd.f32 %v392, %v434
    %v443 = vadd.f32 %v392, %v435
    %v444 = vadd.f32 %v392, %v436
    %v445 = vadd.f32 %v392, %v437
    %v446 = vadd.f32 %v392, %v438
    %s447 = sld [smem:[#allocation6 + $0xf]]
    %v448 = vstv %s447
    %v449 = vmul.f32 %v448, %v355
    %v450 = vmul.f32 %v448, %v356
    %v451 = vmul.f32 %v448, %v357
    %v452 = vmul.f32 %v448, %v358
    %v453 = vmul.f32 %v448, %v359
    %v454 = vmul.f32 %v448, %v360
    %v455 = vmul.f32 %v448, %v361
    %v456 = vmul.f32 %v448, %v362
    %v457 = vadd.f32 %v403, %v449
    %v458 = vadd.f32 %v404, %v450
    %v459 = vadd.f32 %v405, %v451
    %v460 = vadd.f32 %v406, %v452
    %v461 = vadd.f32 %v407, %v453
    %v462 = vadd.f32 %v408, %v454
    %v463 = vadd.f32 %v409, %v455
    %v464 = vadd.f32 %v410, %v456
    %s465 = sld [smem:[#allocation6 + $0x18]]
    %v466 = vstv %s465
    %v467 = vmul.f32 %v466, %v355
    %v468 = vmul.f32 %v466, %v356
    %v469 = vmul.f32 %v466, %v357
    %v470 = vmul.f32 %v466, %v358
    %v471 = vmul.f32 %v466, %v359
    %v472 = vmul.f32 %v466, %v360
    %v473 = vmul.f32 %v466, %v361
    %v474 = vmul.f32 %v466, %v362
    %v475 = vadd.f32 %v421, %v467
    %v476 = vadd.f32 %v422, %v468
    %v477 = vadd.f32 %v423, %v469
    %v478 = vadd.f32 %v424, %v470
    %v479 = vadd.f32 %v425, %v471
    %v480 = vadd.f32 %v426, %v472
    %v481 = vadd.f32 %v427, %v473
    %v482 = vadd.f32 %v428, %v474
    %s483 = sld [smem:[#allocation6 + $0x21]]
    %v484 = vstv %s483
    %v485 = vmul.f32 %v484, %v355
    %v486 = vmul.f32 %v484, %v356
    %v487 = vmul.f32 %v484, %v357
    %v488 = vmul.f32 %v484, %v358
    %v489 = vmul.f32 %v484, %v359
    %v490 = vmul.f32 %v484, %v360
    %v491 = vmul.f32 %v484, %v361
    %v492 = vmul.f32 %v484, %v362
    %v493 = vadd.f32 %v439, %v485
    %v494 = vadd.f32 %v440, %v486
    %v495 = vadd.f32 %v441, %v487
    %v496 = vadd.f32 %v442, %v488
    %v497 = vadd.f32 %v443, %v489
    %v498 = vadd.f32 %v444, %v490
    %v499 = vadd.f32 %v445, %v491
    %v500 = vadd.f32 %v446, %v492
    %s501 = sld [smem:[#allocation6 + $0x12]]
    %v502 = vstv %s501
    %v503 = vmul.f32 %v502, %v379
    %v504 = vmul.f32 %v502, %v380
    %v505 = vmul.f32 %v502, %v381
    %v506 = vmul.f32 %v502, %v382
    %v507 = vmul.f32 %v502, %v383
    %v508 = vmul.f32 %v502, %v384
    %v509 = vmul.f32 %v502, %v385
    %v510 = vmul.f32 %v502, %v386
    %v511 = vadd.f32 %v457, %v503
    %v512 = vadd.f32 %v458, %v504
    %v513 = vadd.f32 %v459, %v505
    %v514 = vadd.f32 %v460, %v506
    %v515 = vadd.f32 %v461, %v507
    %v516 = vadd.f32 %v462, %v508
    %v517 = vadd.f32 %v463, %v509
    %v518 = vadd.f32 %v464, %v510
    %s519 = sld [smem:[#allocation6 + $0x1b]]
    %v520 = vstv %s519
    %v521 = vmul.f32 %v520, %v379
    %v522 = vmul.f32 %v520, %v380
    %v523 = vmul.f32 %v520, %v381
    %v524 = vmul.f32 %v520, %v382
    %v525 = vmul.f32 %v520, %v383
    %v526 = vmul.f32 %v520, %v384
    %v527 = vmul.f32 %v520, %v385
    %v528 = vmul.f32 %v520, %v386
    %v529 = vadd.f32 %v475, %v521
    %v530 = vadd.f32 %v476, %v522
    %v531 = vadd.f32 %v477, %v523
    %v532 = vadd.f32 %v478, %v524
    %v533 = vadd.f32 %v479, %v525
    %v534 = vadd.f32 %v480, %v526
    %v535 = vadd.f32 %v481, %v527
    %v536 = vadd.f32 %v482, %v528
    %s537 = sld [smem:[#allocation6 + $0x24]]
    %v538 = vstv %s537
    %v539 = vmul.f32 %v538, %v379
    %v540 = vmul.f32 %v538, %v380
    %v541 = vmul.f32 %v538, %v381
    %v542 = vmul.f32 %v538, %v382
    %v543 = vmul.f32 %v538, %v383
    %v544 = vmul.f32 %v538, %v384
    %v545 = vmul.f32 %v538, %v385
    %v546 = vmul.f32 %v538, %v386
    %v547 = vadd.f32 %v493, %v539
    %v548 = vadd.f32 %v494, %v540
    %v549 = vadd.f32 %v495, %v541
    %v550 = vadd.f32 %v496, %v542
    %v551 = vadd.f32 %v497, %v543
    %v552 = vadd.f32 %v498, %v544
    %v553 = vadd.f32 %v499, %v545
    %v554 = vadd.f32 %v500, %v546
    %563 = vst [vmem:[#allocation1] ss:$9 sm:$0xff] %v331
    %s564 = scalar_lea.vmem [#allocation1], 1
    %565 = vst [vmem:[%s564] ss:$9 sm:$0xff] %v332
    %s566 = scalar_lea.vmem [#allocation1], 2
    %567 = vst [vmem:[%s566] ss:$9 sm:$0xff] %v333
    %s568 = scalar_lea.vmem [#allocation1], 3
    %569 = vst [vmem:[%s568] ss:$9 sm:$0xff] %v334
    %s570 = scalar_lea.vmem [#allocation1], 4
    %571 = vst [vmem:[%s570] ss:$9 sm:$0xff] %v335
    %s572 = scalar_lea.vmem [#allocation1], 5
    %573 = vst [vmem:[%s572] ss:$9 sm:$0xff] %v336
    %s574 = scalar_lea.vmem [#allocation1], 6
    %575 = vst [vmem:[%s574] ss:$9 sm:$0xff] %v337
    %s576 = scalar_lea.vmem [#allocation1], 7
    %577 = vst [vmem:[%s576] ss:$9 sm:$0xff] %v338
    %v578 = vld [vmem:[#allocation1] sm:$0xff]
    %579 = vrot.lane.b32.xlu0 %v578, 127
    %v580 = vpop.permute.xlu0 %579
    %v582 = vsel %vm136, %v580, 0.0
    %s583 = sld [smem:[#allocation6 + $0xd]]
    %v584 = vstv %s583
    %v585 = vmul.f32 %v584, %v582
    %v587 = vrot.slane %v585, 1
    %v588 = vrot.slane %v585, 2
    %v589 = vrot.slane %v585, 3
    %v590 = vrot.slane %v585, 4
    %v591 = vrot.slane %v585, 5
    %v592 = vrot.slane %v585, 6
    %v593 = vrot.slane %v585, 7
    %v601 = vadd.f32 %v511, %v585
    %v602 = vadd.f32 %v512, %v587
    %v603 = vadd.f32 %v513, %v588
    %v604 = vadd.f32 %v514, %v589
    %v605 = vadd.f32 %v515, %v590
    %v606 = vadd.f32 %v516, %v591
    %v607 = vadd.f32 %v517, %v592
    %v608 = vadd.f32 %v518, %v593
    %s609 = sld [smem:[#allocation6 + $0x16]]
    %v610 = vstv %s609
    %v611 = vmul.f32 %v610, %v582
    %v613 = vrot.slane %v611, 1
    %v614 = vrot.slane %v611, 2
    %v615 = vrot.slane %v611, 3
    %v616 = vrot.slane %v611, 4
    %v617 = vrot.slane %v611, 5
    %v618 = vrot.slane %v611, 6
    %v619 = vrot.slane %v611, 7
    %v627 = vadd.f32 %v529, %v611
    %v628 = vadd.f32 %v530, %v613
    %v629 = vadd.f32 %v531, %v614
    %v630 = vadd.f32 %v532, %v615
    %v631 = vadd.f32 %v533, %v616
    %v632 = vadd.f32 %v534, %v617
    %v633 = vadd.f32 %v535, %v618
    %v634 = vadd.f32 %v536, %v619
    %s635 = sld [smem:[#allocation6 + $0x1f]]
    %v636 = vstv %s635
    %v637 = vmul.f32 %v636, %v582
    %v639 = vrot.slane %v637, 1
    %v640 = vrot.slane %v637, 2
    %v641 = vrot.slane %v637, 3
    %v642 = vrot.slane %v637, 4
    %v643 = vrot.slane %v637, 5
    %v644 = vrot.slane %v637, 6
    %v645 = vrot.slane %v637, 7
    %v653 = vadd.f32 %v547, %v637
    %v654 = vadd.f32 %v548, %v639
    %v655 = vadd.f32 %v549, %v640
    %v656 = vadd.f32 %v550, %v641
    %v657 = vadd.f32 %v551, %v642
    %v658 = vadd.f32 %v552, %v643
    %v659 = vadd.f32 %v553, %v644
    %v660 = vadd.f32 %v554, %v645
    %669 = vst [vmem:[#allocation1] ss:$9 sm:$0xff] %v355
    %s670 = scalar_lea.vmem [#allocation1], 1
    %671 = vst [vmem:[%s670] ss:$9 sm:$0xff] %v356
    %s672 = scalar_lea.vmem [#allocation1], 2
    %673 = vst [vmem:[%s672] ss:$9 sm:$0xff] %v357
    %s674 = scalar_lea.vmem [#allocation1], 3
    %675 = vst [vmem:[%s674] ss:$9 sm:$0xff] %v358
    %s676 = scalar_lea.vmem [#allocation1], 4
    %677 = vst [vmem:[%s676] ss:$9 sm:$0xff] %v359
    %s678 = scalar_lea.vmem [#allocation1], 5
    %679 = vst [vmem:[%s678] ss:$9 sm:$0xff] %v360
    %s680 = scalar_lea.vmem [#allocation1], 6
    %681 = vst [vmem:[%s680] ss:$9 sm:$0xff] %v361
    %s682 = scalar_lea.vmem [#allocation1], 7
    %683 = vst [vmem:[%s682] ss:$9 sm:$0xff] %v362
    %v684 = vld [vmem:[#allocation1] sm:$0xff]
    %685 = vrot.lane.b32.xlu0 %v684, 127
    %v686 = vpop.permute.xlu0 %685
    %v688 = vsel %vm136, %v686, 0.0
    %s689 = sld [smem:[#allocation6 + $0x10]]
    %v690 = vstv %s689
    %v691 = vmul.f32 %v690, %v688
    %v693 = vrot.slane %v691, 1
    %v694 = vrot.slane %v691, 2
    %v695 = vrot.slane %v691, 3
    %v696 = vrot.slane %v691, 4
    %v697 = vrot.slane %v691, 5
    %v698 = vrot.slane %v691, 6
    %v699 = vrot.slane %v691, 7
    %v707 = vadd.f32 %v601, %v691
    %v708 = vadd.f32 %v602, %v693
    %v709 = vadd.f32 %v603, %v694
    %v710 = vadd.f32 %v604, %v695
    %v711 = vadd.f32 %v605, %v696
    %v712 = vadd.f32 %v606, %v697
    %v713 = vadd.f32 %v607, %v698
    %v714 = vadd.f32 %v608, %v699
    %s715 = sld [smem:[#allocation6 + $0x19]]
    %v716 = vstv %s715
    %v717 = vmul.f32 %v716, %v688
    %v719 = vrot.slane %v717, 1
    %v720 = vrot.slane %v717, 2
    %v721 = vrot.slane %v717, 3
    %v722 = vrot.slane %v717, 4
    %v723 = vrot.slane %v717, 5
    %v724 = vrot.slane %v717, 6
    %v725 = vrot.slane %v717, 7
    %v733 = vadd.f32 %v627, %v717
    %v734 = vadd.f32 %v628, %v719
    %v735 = vadd.f32 %v629, %v720
    %v736 = vadd.f32 %v630, %v721
    %v737 = vadd.f32 %v631, %v722
    %v738 = vadd.f32 %v632, %v723
    %v739 = vadd.f32 %v633, %v724
    %v740 = vadd.f32 %v634, %v725
    %s741 = sld [smem:[#allocation6 + $0x22]]
    %v742 = vstv %s741
    %v743 = vmul.f32 %v742, %v688
    %v745 = vrot.slane %v743, 1
    %v746 = vrot.slane %v743, 2
    %v747 = vrot.slane %v743, 3
    %v748 = vrot.slane %v743, 4
    %v749 = vrot.slane %v743, 5
    %v750 = vrot.slane %v743, 6
    %v751 = vrot.slane %v743, 7
    %v759 = vadd.f32 %v653, %v743
    %v760 = vadd.f32 %v654, %v745
    %v761 = vadd.f32 %v655, %v746
    %v762 = vadd.f32 %v656, %v747
    %v763 = vadd.f32 %v657, %v748
    %v764 = vadd.f32 %v658, %v749
    %v765 = vadd.f32 %v659, %v750
    %v766 = vadd.f32 %v660, %v751
    %775 = vst [vmem:[#allocation1] ss:$9 sm:$0xff] %v379
    %s776 = scalar_lea.vmem [#allocation1], 1
    %777 = vst [vmem:[%s776] ss:$9 sm:$0xff] %v380
    %s778 = scalar_lea.vmem [#allocation1], 2
    %779 = vst [vmem:[%s778] ss:$9 sm:$0xff] %v381
    %s780 = scalar_lea.vmem [#allocation1], 3
    %781 = vst [vmem:[%s780] ss:$9 sm:$0xff] %v382
    %s782 = scalar_lea.vmem [#allocation1], 4
    %783 = vst [vmem:[%s782] ss:$9 sm:$0xff] %v383
    %s784 = scalar_lea.vmem [#allocation1], 5
    %785 = vst [vmem:[%s784] ss:$9 sm:$0xff] %v384
    %s786 = scalar_lea.vmem [#allocation1], 6
    %787 = vst [vmem:[%s786] ss:$9 sm:$0xff] %v385
    %s788 = scalar_lea.vmem [#allocation1], 7
    %789 = vst [vmem:[%s788] ss:$9 sm:$0xff] %v386
    %v790 = vld [vmem:[#allocation1] sm:$0xff]
    %791 = vrot.lane.b32.xlu0 %v790, 127
    %v792 = vpop.permute.xlu0 %791
    %v794 = vsel %vm136, %v792, 0.0
    %s795 = sld [smem:[#allocation6 + $0x13]]
    %v796 = vstv %s795
    %v797 = vmul.f32 %v796, %v794
    %v799 = vrot.slane %v797, 1
    %v800 = vrot.slane %v797, 2
    %v801 = vrot.slane %v797, 3
    %v802 = vrot.slane %v797, 4
    %v803 = vrot.slane %v797, 5
    %v804 = vrot.slane %v797, 6
    %v805 = vrot.slane %v797, 7
    %v813 = vadd.f32 %v707, %v797
    %v814 = vadd.f32 %v708, %v799
    %v815 = vadd.f32 %v709, %v800
    %v816 = vadd.f32 %v710, %v801
    %v817 = vadd.f32 %v711, %v802
    %v818 = vadd.f32 %v712, %v803
    %v819 = vadd.f32 %v713, %v804
    %v820 = vadd.f32 %v714, %v805
    %s821 = sld [smem:[#allocation6 + $0x1c]]
    %v822 = vstv %s821
    %v823 = vmul.f32 %v822, %v794
    %v825 = vrot.slane %v823, 1
    %v826 = vrot.slane %v823, 2
    %v827 = vrot.slane %v823, 3
    %v828 = vrot.slane %v823, 4
    %v829 = vrot.slane %v823, 5
    %v830 = vrot.slane %v823, 6
    %v831 = vrot.slane %v823, 7
    %v839 = vadd.f32 %v733, %v823
    %v840 = vadd.f32 %v734, %v825
    %v841 = vadd.f32 %v735, %v826
    %v842 = vadd.f32 %v736, %v827
    %v843 = vadd.f32 %v737, %v828
    %v844 = vadd.f32 %v738, %v829
    %v845 = vadd.f32 %v739, %v830
    %v846 = vadd.f32 %v740, %v831
    %s847 = sld [smem:[#allocation6 + $0x25]]
    %v848 = vstv %s847
    %v849 = vmul.f32 %v848, %v794
    %v851 = vrot.slane %v849, 1
    %v852 = vrot.slane %v849, 2
    %v853 = vrot.slane %v849, 3
    %v854 = vrot.slane %v849, 4
    %v855 = vrot.slane %v849, 5
    %v856 = vrot.slane %v849, 6
    %v857 = vrot.slane %v849, 7
    %v865 = vadd.f32 %v759, %v849
    %v866 = vadd.f32 %v760, %v851
    %v867 = vadd.f32 %v761, %v852
    %v868 = vadd.f32 %v762, %v853
    %v869 = vadd.f32 %v763, %v854
    %v870 = vadd.f32 %v764, %v855
    %v871 = vadd.f32 %v765, %v856
    %v872 = vadd.f32 %v766, %v857
    %873 = vst [vmem:[#allocation1] ss:$9 sm:$0xff] %v331
    %s874 = scalar_lea.vmem [#allocation1], 1
    %875 = vst [vmem:[%s874] ss:$9 sm:$0xff] %v332
    %s876 = scalar_lea.vmem [#allocation1], 2
    %877 = vst [vmem:[%s876] ss:$9 sm:$0xff] %v333
    %s878 = scalar_lea.vmem [#allocation1], 3
    %879 = vst [vmem:[%s878] ss:$9 sm:$0xff] %v334
    %s880 = scalar_lea.vmem [#allocation1], 4
    %881 = vst [vmem:[%s880] ss:$9 sm:$0xff] %v335
    %s882 = scalar_lea.vmem [#allocation1], 5
    %883 = vst [vmem:[%s882] ss:$9 sm:$0xff] %v336
    %s884 = scalar_lea.vmem [#allocation1], 6
    %885 = vst [vmem:[%s884] ss:$9 sm:$0xff] %v337
    %s886 = scalar_lea.vmem [#allocation1], 7
    %887 = vst [vmem:[%s886] ss:$9 sm:$0xff] %v338
    %v888 = vld [vmem:[#allocation1] sm:$0xff]
    %889 = vrot.lane.b32.xlu0 %v888, 126
    %v890 = vpop.permute.xlu0 %889
    %v892 = vsel %vm235, %v890, 0.0
    %s893 = sld [smem:[#allocation6 + $0xe]]
    %v894 = vstv %s893
    %v895 = vmul.f32 %v894, %v892
    %v897 = vrot.slane %v895, 1
    %v898 = vrot.slane %v895, 2
    %v899 = vrot.slane %v895, 3
    %v900 = vrot.slane %v895, 4
    %v901 = vrot.slane %v895, 5
    %v902 = vrot.slane %v895, 6
    %v903 = vrot.slane %v895, 7
    %v911 = vadd.f32 %v813, %v895
    %v912 = vadd.f32 %v814, %v897
    %v913 = vadd.f32 %v815, %v898
    %v914 = vadd.f32 %v816, %v899
    %v915 = vadd.f32 %v817, %v900
    %v916 = vadd.f32 %v818, %v901
    %v917 = vadd.f32 %v819, %v902
    %v918 = vadd.f32 %v820, %v903
    %s919 = sld [smem:[#allocation6 + $0x17]]
    %v920 = vstv %s919
    %v921 = vmul.f32 %v920, %v892
    %v923 = vrot.slane %v921, 1
    %v924 = vrot.slane %v921, 2
    %v925 = vrot.slane %v921, 3
    %v926 = vrot.slane %v921, 4
    %v927 = vrot.slane %v921, 5
    %v928 = vrot.slane %v921, 6
    %v929 = vrot.slane %v921, 7
    %v937 = vadd.f32 %v839, %v921
    %v938 = vadd.f32 %v840, %v923
    %v939 = vadd.f32 %v841, %v924
    %v940 = vadd.f32 %v842, %v925
    %v941 = vadd.f32 %v843, %v926
    %v942 = vadd.f32 %v844, %v927
    %v943 = vadd.f32 %v845, %v928
    %v944 = vadd.f32 %v846, %v929
    %s945 = sld [smem:[#allocation6 + $0x20]]
    %v946 = vstv %s945
    %v947 = vmul.f32 %v946, %v892
    %v949 = vrot.slane %v947, 1
    %v950 = vrot.slane %v947, 2
    %v951 = vrot.slane %v947, 3
    %v952 = vrot.slane %v947, 4
    %v953 = vrot.slane %v947, 5
    %v954 = vrot.slane %v947, 6
    %v955 = vrot.slane %v947, 7
    %v963 = vadd.f32 %v865, %v947
    %v964 = vadd.f32 %v866, %v949
    %v965 = vadd.f32 %v867, %v950
    %v966 = vadd.f32 %v868, %v951
    %v967 = vadd.f32 %v869, %v952
    %v968 = vadd.f32 %v870, %v953
    %v969 = vadd.f32 %v871, %v954
    %v970 = vadd.f32 %v872, %v955
    %971 = vst [vmem:[#allocation1] ss:$9 sm:$0xff] %v355
    %s972 = scalar_lea.vmem [#allocation1], 1
    %973 = vst [vmem:[%s972] ss:$9 sm:$0xff] %v356
    %s974 = scalar_lea.vmem [#allocation1], 2
    %975 = vst [vmem:[%s974] ss:$9 sm:$0xff] %v357
    %s976 = scalar_lea.vmem [#allocation1], 3
    %977 = vst [vmem:[%s976] ss:$9 sm:$0xff] %v358
    %s978 = scalar_lea.vmem [#allocation1], 4
    %979 = vst [vmem:[%s978] ss:$9 sm:$0xff] %v359
    %s980 = scalar_lea.vmem [#allocation1], 5
    %981 = vst [vmem:[%s980] ss:$9 sm:$0xff] %v360
    %s982 = scalar_lea.vmem [#allocation1], 6
    %983 = vst [vmem:[%s982] ss:$9 sm:$0xff] %v361
    %s984 = scalar_lea.vmem [#allocation1], 7
    %985 = vst [vmem:[%s984] ss:$9 sm:$0xff] %v362
    %v986 = vld [vmem:[#allocation1] sm:$0xff]
    %987 = vrot.lane.b32.xlu0 %v986, 126
    %v988 = vpop.permute.xlu0 %987
    %v990 = vsel %vm235, %v988, 0.0
    %s991 = sld [smem:[#allocation6 + $0x11]]
    %v992 = vstv %s991
    %v993 = vmul.f32 %v992, %v990
    %v995 = vrot.slane %v993, 1
    %v996 = vrot.slane %v993, 2
    %v997 = vrot.slane %v993, 3
    %v998 = vrot.slane %v993, 4
    %v999 = vrot.slane %v993, 5
    %v1000 = vrot.slane %v993, 6
    %v1001 = vrot.slane %v993, 7
    %v1009 = vadd.f32 %v911, %v993
    %v1010 = vadd.f32 %v912, %v995
    %v1011 = vadd.f32 %v913, %v996
    %v1012 = vadd.f32 %v914, %v997
    %v1013 = vadd.f32 %v915, %v998
    %v1014 = vadd.f32 %v916, %v999
    %v1015 = vadd.f32 %v917, %v1000
    %v1016 = vadd.f32 %v918, %v1001
    %s1017 = sld [smem:[#allocation6 + $0x1a]]
    %v1018 = vstv %s1017
    %v1019 = vmul.f32 %v1018, %v990
    %v1021 = vrot.slane %v1019, 1
    %v1022 = vrot.slane %v1019, 2
    %v1023 = vrot.slane %v1019, 3
    %v1024 = vrot.slane %v1019, 4
    %v1025 = vrot.slane %v1019, 5
    %v1026 = vrot.slane %v1019, 6
    %v1027 = vrot.slane %v1019, 7
    %v1035 = vadd.f32 %v937, %v1019
    %v1036 = vadd.f32 %v938, %v1021
    %v1037 = vadd.f32 %v939, %v1022
    %v1038 = vadd.f32 %v940, %v1023
    %v1039 = vadd.f32 %v941, %v1024
    %v1040 = vadd.f32 %v942, %v1025
    %v1041 = vadd.f32 %v943, %v1026
    %v1042 = vadd.f32 %v944, %v1027
    %s1043 = sld [smem:[#allocation6 + $0x23]]
    %v1044 = vstv %s1043
    %v1045 = vmul.f32 %v1044, %v990
    %v1047 = vrot.slane %v1045, 1
    %v1048 = vrot.slane %v1045, 2
    %v1049 = vrot.slane %v1045, 3
    %v1050 = vrot.slane %v1045, 4
    %v1051 = vrot.slane %v1045, 5
    %v1052 = vrot.slane %v1045, 6
    %v1053 = vrot.slane %v1045, 7
    %v1061 = vadd.f32 %v963, %v1045
    %v1062 = vadd.f32 %v964, %v1047
    %v1063 = vadd.f32 %v965, %v1048
    %v1064 = vadd.f32 %v966, %v1049
    %v1065 = vadd.f32 %v967, %v1050
    %v1066 = vadd.f32 %v968, %v1051
    %v1067 = vadd.f32 %v969, %v1052
    %v1068 = vadd.f32 %v970, %v1053
    %1069 = vst [vmem:[#allocation1] ss:$9 sm:$0xff] %v379
    %s1070 = scalar_lea.vmem [#allocation1], 1
    %1071 = vst [vmem:[%s1070] ss:$9 sm:$0xff] %v380
    %s1072 = scalar_lea.vmem [#allocation1], 2
    %1073 = vst [vmem:[%s1072] ss:$9 sm:$0xff] %v381
    %s1074 = scalar_lea.vmem [#allocation1], 3
    %1075 = vst [vmem:[%s1074] ss:$9 sm:$0xff] %v382
    %s1076 = scalar_lea.vmem [#allocation1], 4
    %1077 = vst [vmem:[%s1076] ss:$9 sm:$0xff] %v383
    %s1078 = scalar_lea.vmem [#allocation1], 5
    %1079 = vst [vmem:[%s1078] ss:$9 sm:$0xff] %v384
    %s1080 = scalar_lea.vmem [#allocation1], 6
    %1081 = vst [vmem:[%s1080] ss:$9 sm:$0xff] %v385
    %s1082 = scalar_lea.vmem [#allocation1], 7
    %1083 = vst [vmem:[%s1082] ss:$9 sm:$0xff] %v386
    %v1084 = vld [vmem:[#allocation1] sm:$0xff]
    %1085 = vrot.lane.b32.xlu0 %v1084, 126
    %v1086 = vpop.permute.xlu0 %1085
    %v1088 = vsel %vm235, %v1086, 0.0
    %s1089 = sld [smem:[#allocation6 + $0x14]]
    %v1090 = vstv %s1089
    %v1091 = vmul.f32 %v1090, %v1088
    %v1093 = vrot.slane %v1091, 1
    %v1094 = vrot.slane %v1091, 2
    %v1095 = vrot.slane %v1091, 3
    %v1096 = vrot.slane %v1091, 4
    %v1097 = vrot.slane %v1091, 5
    %v1098 = vrot.slane %v1091, 6
    %v1099 = vrot.slane %v1091, 7
    %v1107 = vadd.f32 %v1009, %v1091
    %v1108 = vadd.f32 %v1010, %v1093
    %v1109 = vadd.f32 %v1011, %v1094
    %v1110 = vadd.f32 %v1012, %v1095
    %v1111 = vadd.f32 %v1013, %v1096
    %v1112 = vadd.f32 %v1014, %v1097
    %v1113 = vadd.f32 %v1015, %v1098
    %v1114 = vadd.f32 %v1016, %v1099
    %s1115 = sld [smem:[#allocation6 + $0x1d]]
    %v1116 = vstv %s1115
    %v1117 = vmul.f32 %v1116, %v1088
    %v1119 = vrot.slane %v1117, 1
    %v1120 = vrot.slane %v1117, 2
    %v1121 = vrot.slane %v1117, 3
    %v1122 = vrot.slane %v1117, 4
    %v1123 = vrot.slane %v1117, 5
    %v1124 = vrot.slane %v1117, 6
    %v1125 = vrot.slane %v1117, 7
    %v1133 = vadd.f32 %v1035, %v1117
    %v1134 = vadd.f32 %v1036, %v1119
    %v1135 = vadd.f32 %v1037, %v1120
    %v1136 = vadd.f32 %v1038, %v1121
    %v1137 = vadd.f32 %v1039, %v1122
    %v1138 = vadd.f32 %v1040, %v1123
    %v1139 = vadd.f32 %v1041, %v1124
    %v1140 = vadd.f32 %v1042, %v1125
    %s1141 = sld [smem:[#allocation6 + $0x26]]
    %v1142 = vstv %s1141
    %v1143 = vmul.f32 %v1142, %v1088
    %v1145 = vrot.slane %v1143, 1
    %v1146 = vrot.slane %v1143, 2
    %v1147 = vrot.slane %v1143, 3
    %v1148 = vrot.slane %v1143, 4
    %v1149 = vrot.slane %v1143, 5
    %v1150 = vrot.slane %v1143, 6
    %v1151 = vrot.slane %v1143, 7
    %v1159 = vadd.f32 %v1061, %v1143
    %v1160 = vadd.f32 %v1062, %v1145
    %v1161 = vadd.f32 %v1063, %v1146
    %v1162 = vadd.f32 %v1064, %v1147
    %v1163 = vadd.f32 %v1065, %v1148
    %v1164 = vadd.f32 %v1066, %v1149
    %v1165 = vadd.f32 %v1067, %v1150
    %v1166 = vadd.f32 %v1068, %v1151
    %vm1167 = vcmp.ge.f32.partialorder %v1107, 0.0
    %vm1168 = vcmp.ge.f32.partialorder %v1108, 0.0
    %vm1169 = vcmp.ge.f32.partialorder %v1109, 0.0
    %vm1170 = vcmp.ge.f32.partialorder %v1110, 0.0
    %vm1171 = vcmp.ge.f32.partialorder %v1111, 0.0
    %vm1172 = vcmp.ge.f32.partialorder %v1112, 0.0
    %vm1173 = vcmp.ge.f32.partialorder %v1113, 0.0
    %vm1174 = vcmp.ge.f32.partialorder %v1114, 0.0
    %v1175 = vmul.f32 %v1107, 0.01
    %v1176 = vmul.f32 %v1108, 0.01
    %v1177 = vmul.f32 %v1109, 0.01
    %v1178 = vmul.f32 %v1110, 0.01
    %v1179 = vmul.f32 %v1111, 0.01
    %v1180 = vmul.f32 %v1112, 0.01
    %v1181 = vmul.f32 %v1113, 0.01
    %v1182 = vmul.f32 %v1114, 0.01
    %v1183 = vsel %vm1167, %v1107, %v1175
    %v1184 = vsel %vm1168, %v1108, %v1176
    %v1185 = vsel %vm1169, %v1109, %v1177
    %v1186 = vsel %vm1170, %v1110, %v1178
    %v1187 = vsel %vm1171, %v1111, %v1179
    %v1188 = vsel %vm1172, %v1112, %v1180
    %v1189 = vsel %vm1173, %v1113, %v1181
    %v1190 = vsel %vm1174, %v1114, %v1182
    %vm1191 = vcmp.ge.f32.partialorder %v1133, 0.0
    %vm1192 = vcmp.ge.f32.partialorder %v1134, 0.0
    %vm1193 = vcmp.ge.f32.partialorder %v1135, 0.0
    %vm1194 = vcmp.ge.f32.partialorder %v1136, 0.0
    %vm1195 = vcmp.ge.f32.partialorder %v1137, 0.0
    %vm1196 = vcmp.ge.f32.partialorder %v1138, 0.0
    %vm1197 = vcmp.ge.f32.partialorder %v1139, 0.0
    %vm1198 = vcmp.ge.f32.partialorder %v1140, 0.0
    %v1199 = vmul.f32 %v1133, 0.01
    %v1200 = vmul.f32 %v1134, 0.01
    %v1201 = vmul.f32 %v1135, 0.01
    %v1202 = vmul.f32 %v1136, 0.01
    %v1203 = vmul.f32 %v1137, 0.01
    %v1204 = vmul.f32 %v1138, 0.01
    %v1205 = vmul.f32 %v1139, 0.01
    %v1206 = vmul.f32 %v1140, 0.01
    %v1207 = vsel %vm1191, %v1133, %v1199
    %v1208 = vsel %vm1192, %v1134, %v1200
    %v1209 = vsel %vm1193, %v1135, %v1201
    %v1210 = vsel %vm1194, %v1136, %v1202
    %v1211 = vsel %vm1195, %v1137, %v1203
    %v1212 = vsel %vm1196, %v1138, %v1204
    %v1213 = vsel %vm1197, %v1139, %v1205
    %v1214 = vsel %vm1198, %v1140, %v1206
    %vm1215 = vcmp.ge.f32.partialorder %v1159, 0.0
    %vm1216 = vcmp.ge.f32.partialorder %v1160, 0.0
    %vm1217 = vcmp.ge.f32.partialorder %v1161, 0.0
    %vm1218 = vcmp.ge.f32.partialorder %v1162, 0.0
    %vm1219 = vcmp.ge.f32.partialorder %v1163, 0.0
    %vm1220 = vcmp.ge.f32.partialorder %v1164, 0.0
    %vm1221 = vcmp.ge.f32.partialorder %v1165, 0.0
    %vm1222 = vcmp.ge.f32.partialorder %v1166, 0.0
    %v1223 = vmul.f32 %v1159, 0.01
    %v1224 = vmul.f32 %v1160, 0.01
    %v1225 = vmul.f32 %v1161, 0.01
    %v1226 = vmul.f32 %v1162, 0.01
    %v1227 = vmul.f32 %v1163, 0.01
    %v1228 = vmul.f32 %v1164, 0.01
    %v1229 = vmul.f32 %v1165, 0.01
    %v1230 = vmul.f32 %v1166, 0.01
    %v1231 = vsel %vm1215, %v1159, %v1223
    %v1232 = vsel %vm1216, %v1160, %v1224
    %v1233 = vsel %vm1217, %v1161, %v1225
    %v1234 = vsel %vm1218, %v1162, %v1226
    %v1235 = vsel %vm1219, %v1163, %v1227
    %v1236 = vsel %vm1220, %v1164, %v1228
    %v1237 = vsel %vm1221, %v1165, %v1229
    %v1238 = vsel %vm1222, %v1166, %v1230
    %s1239 = sld [smem:[#allocation6 + $0x3c]]
    %v1240 = vstv %s1239
    %s1241 = sld [smem:[#allocation6 + $0x3d]]
    %v1242 = vstv %s1241
    %s1243 = sld [smem:[#allocation6 + $0x3e]]
    %v1244 = vstv %s1243
    %s1245 = sld [smem:[#allocation6 + $0x2a]]
    %v1246 = vstv %s1245
    %v1247 = vmul.f32 %v1246, %v1183
    %v1248 = vmul.f32 %v1246, %v1184
    %v1249 = vmul.f32 %v1246, %v1185
    %v1250 = vmul.f32 %v1246, %v1186
    %v1251 = vmul.f32 %v1246, %v1187
    %v1252 = vmul.f32 %v1246, %v1188
    %v1253 = vmul.f32 %v1246, %v1189
    %v1254 = vmul.f32 %v1246, %v1190
    %v1255 = vadd.f32 %v1240, %v1247
    %v1256 = vadd.f32 %v1240, %v1248
    %v1257 = vadd.f32 %v1240, %v1249
    %v1258 = vadd.f32 %v1240, %v1250
    %v1259 = vadd.f32 %v1240, %v1251
    %v1260 = vadd.f32 %v1240, %v1252
    %v1261 = vadd.f32 %v1240, %v1253
    %v1262 = vadd.f32 %v1240, %v1254
    %s1263 = sld [smem:[#allocation6 + $0x30]]
    %v1264 = vstv %s1263
    %v1265 = vmul.f32 %v1264, %v1183
    %v1266 = vmul.f32 %v1264, %v1184
    %v1267 = vmul.f32 %v1264, %v1185
    %v1268 = vmul.f32 %v1264, %v1186
    %v1269 = vmul.f32 %v1264, %v1187
    %v1270 = vmul.f32 %v1264, %v1188
    %v1271 = vmul.f32 %v1264, %v1189
    %v1272 = vmul.f32 %v1264, %v1190
    %v1273 = vadd.f32 %v1242, %v1265
    %v1274 = vadd.f32 %v1242, %v1266
    %v1275 = vadd.f32 %v1242, %v1267
    %v1276 = vadd.f32 %v1242, %v1268
    %v1277 = vadd.f32 %v1242, %v1269
    %v1278 = vadd.f32 %v1242, %v1270
    %v1279 = vadd.f32 %v1242, %v1271
    %v1280 = vadd.f32 %v1242, %v1272
    %s1281 = sld [smem:[#allocation6 + $0x36]]
    %v1282 = vstv %s1281
    %v1283 = vmul.f32 %v1282, %v1183
    %v1284 = vmul.f32 %v1282, %v1184
    %v1285 = vmul.f32 %v1282, %v1185
    %v1286 = vmul.f32 %v1282, %v1186
    %v1287 = vmul.f32 %v1282, %v1187
    %v1288 = vmul.f32 %v1282, %v1188
    %v1289 = vmul.f32 %v1282, %v1189
    %v1290 = vmul.f32 %v1282, %v1190
    %v1291 = vadd.f32 %v1244, %v1283
    %v1292 = vadd.f32 %v1244, %v1284
    %v1293 = vadd.f32 %v1244, %v1285
    %v1294 = vadd.f32 %v1244, %v1286
    %v1295 = vadd.f32 %v1244, %v1287
    %v1296 = vadd.f32 %v1244, %v1288
    %v1297 = vadd.f32 %v1244, %v1289
    %v1298 = vadd.f32 %v1244, %v1290
    %s1299 = sld [smem:[#allocation6 + $0x2c]]
    %v1300 = vstv %s1299
    %v1301 = vmul.f32 %v1300, %v1207
    %v1302 = vmul.f32 %v1300, %v1208
    %v1303 = vmul.f32 %v1300, %v1209
    %v1304 = vmul.f32 %v1300, %v1210
    %v1305 = vmul.f32 %v1300, %v1211
    %v1306 = vmul.f32 %v1300, %v1212
    %v1307 = vmul.f32 %v1300, %v1213
    %v1308 = vmul.f32 %v1300, %v1214
    %v1309 = vadd.f32 %v1255, %v1301
    %v1310 = vadd.f32 %v1256, %v1302
    %v1311 = vadd.f32 %v1257, %v1303
    %v1312 = vadd.f32 %v1258, %v1304
    %v1313 = vadd.f32 %v1259, %v1305
    %v1314 = vadd.f32 %v1260, %v1306
    %v1315 = vadd.f32 %v1261, %v1307
    %v1316 = vadd.f32 %v1262, %v1308
    %s1317 = sld [smem:[#allocation6 + $0x32]]
    %v1318 = vstv %s1317
    %v1319 = vmul.f32 %v1318, %v1207
    %v1320 = vmul.f32 %v1318, %v1208
    %v1321 = vmul.f32 %v1318, %v1209
    %v1322 = vmul.f32 %v1318, %v1210
    %v1323 = vmul.f32 %v1318, %v1211
    %v1324 = vmul.f32 %v1318, %v1212
    %v1325 = vmul.f32 %v1318, %v1213
    %v1326 = vmul.f32 %v1318, %v1214
    %v1327 = vadd.f32 %v1273, %v1319
    %v1328 = vadd.f32 %v1274, %v1320
    %v1329 = vadd.f32 %v1275, %v1321
    %v1330 = vadd.f32 %v1276, %v1322
    %v1331 = vadd.f32 %v1277, %v1323
    %v1332 = vadd.f32 %v1278, %v1324
    %v1333 = vadd.f32 %v1279, %v1325
    %v1334 = vadd.f32 %v1280, %v1326
    %s1335 = sld [smem:[#allocation6 + $0x38]]
    %v1336 = vstv %s1335
    %v1337 = vmul.f32 %v1336, %v1207
    %v1338 = vmul.f32 %v1336, %v1208
    %v1339 = vmul.f32 %v1336, %v1209
    %v1340 = vmul.f32 %v1336, %v1210
    %v1341 = vmul.f32 %v1336, %v1211
    %v1342 = vmul.f32 %v1336, %v1212
    %v1343 = vmul.f32 %v1336, %v1213
    %v1344 = vmul.f32 %v1336, %v1214
    %v1345 = vadd.f32 %v1291, %v1337
    %v1346 = vadd.f32 %v1292, %v1338
    %v1347 = vadd.f32 %v1293, %v1339
    %v1348 = vadd.f32 %v1294, %v1340
    %v1349 = vadd.f32 %v1295, %v1341
    %v1350 = vadd.f32 %v1296, %v1342
    %v1351 = vadd.f32 %v1297, %v1343
    %v1352 = vadd.f32 %v1298, %v1344
    %s1353 = sld [smem:[#allocation6 + $0x2e]]
    %v1354 = vstv %s1353
    %v1355 = vmul.f32 %v1354, %v1231
    %v1356 = vmul.f32 %v1354, %v1232
    %v1357 = vmul.f32 %v1354, %v1233
    %v1358 = vmul.f32 %v1354, %v1234
    %v1359 = vmul.f32 %v1354, %v1235
    %v1360 = vmul.f32 %v1354, %v1236
    %v1361 = vmul.f32 %v1354, %v1237
    %v1362 = vmul.f32 %v1354, %v1238
    %v1363 = vadd.f32 %v1309, %v1355
    %v1364 = vadd.f32 %v1310, %v1356
    %v1365 = vadd.f32 %v1311, %v1357
    %v1366 = vadd.f32 %v1312, %v1358
    %v1367 = vadd.f32 %v1313, %v1359
    %v1368 = vadd.f32 %v1314, %v1360
    %v1369 = vadd.f32 %v1315, %v1361
    %v1370 = vadd.f32 %v1316, %v1362
    %s1371 = sld [smem:[#allocation6 + $0x34]]
    %v1372 = vstv %s1371
    %v1373 = vmul.f32 %v1372, %v1231
    %v1374 = vmul.f32 %v1372, %v1232
    %v1375 = vmul.f32 %v1372, %v1233
    %v1376 = vmul.f32 %v1372, %v1234
    %v1377 = vmul.f32 %v1372, %v1235
    %v1378 = vmul.f32 %v1372, %v1236
    %v1379 = vmul.f32 %v1372, %v1237
    %v1380 = vmul.f32 %v1372, %v1238
    %v1381 = vadd.f32 %v1327, %v1373
    %v1382 = vadd.f32 %v1328, %v1374
    %v1383 = vadd.f32 %v1329, %v1375
    %v1384 = vadd.f32 %v1330, %v1376
    %v1385 = vadd.f32 %v1331, %v1377
    %v1386 = vadd.f32 %v1332, %v1378
    %v1387 = vadd.f32 %v1333, %v1379
    %v1388 = vadd.f32 %v1334, %v1380
    %s1389 = sld [smem:[#allocation6 + $0x3a]]
    %v1390 = vstv %s1389
    %v1391 = vmul.f32 %v1390, %v1231
    %v1392 = vmul.f32 %v1390, %v1232
    %v1393 = vmul.f32 %v1390, %v1233
    %v1394 = vmul.f32 %v1390, %v1234
    %v1395 = vmul.f32 %v1390, %v1235
    %v1396 = vmul.f32 %v1390, %v1236
    %v1397 = vmul.f32 %v1390, %v1237
    %v1398 = vmul.f32 %v1390, %v1238
    %v1399 = vadd.f32 %v1345, %v1391
    %v1400 = vadd.f32 %v1346, %v1392
    %v1401 = vadd.f32 %v1347, %v1393
    %v1402 = vadd.f32 %v1348, %v1394
    %v1403 = vadd.f32 %v1349, %v1395
    %v1404 = vadd.f32 %v1350, %v1396
    %v1405 = vadd.f32 %v1351, %v1397
    %v1406 = vadd.f32 %v1352, %v1398
    %1415 = vst [vmem:[#allocation1] ss:$9 sm:$0xff] %v1183
    %s1416 = scalar_lea.vmem [#allocation1], 1
    %1417 = vst [vmem:[%s1416] ss:$9 sm:$0xff] %v1184
    %s1418 = scalar_lea.vmem [#allocation1], 2
    %1419 = vst [vmem:[%s1418] ss:$9 sm:$0xff] %v1185
    %s1420 = scalar_lea.vmem [#allocation1], 3
    %1421 = vst [vmem:[%s1420] ss:$9 sm:$0xff] %v1186
    %s1422 = scalar_lea.vmem [#allocation1], 4
    %1423 = vst [vmem:[%s1422] ss:$9 sm:$0xff] %v1187
    %s1424 = scalar_lea.vmem [#allocation1], 5
    %1425 = vst [vmem:[%s1424] ss:$9 sm:$0xff] %v1188
    %s1426 = scalar_lea.vmem [#allocation1], 6
    %1427 = vst [vmem:[%s1426] ss:$9 sm:$0xff] %v1189
    %s1428 = scalar_lea.vmem [#allocation1], 7
    %1429 = vst [vmem:[%s1428] ss:$9 sm:$0xff] %v1190
    %v1430 = vld [vmem:[#allocation1] sm:$0xff]
    %1431 = vrot.lane.b32.xlu0 %v1430, 127
    %v1432 = vpop.permute.xlu0 %1431
    %v1434 = vsel %vm136, %v1432, 0.0
    %s1435 = sld [smem:[#allocation6 + $0x2b]]
    %v1436 = vstv %s1435
    %v1437 = vmul.f32 %v1436, %v1434
    %v1439 = vrot.slane %v1437, 1
    %v1440 = vrot.slane %v1437, 2
    %v1441 = vrot.slane %v1437, 3
    %v1442 = vrot.slane %v1437, 4
    %v1443 = vrot.slane %v1437, 5
    %v1444 = vrot.slane %v1437, 6
    %v1445 = vrot.slane %v1437, 7
    %v1453 = vadd.f32 %v1363, %v1437
    %v1454 = vadd.f32 %v1364, %v1439
    %v1455 = vadd.f32 %v1365, %v1440
    %v1456 = vadd.f32 %v1366, %v1441
    %v1457 = vadd.f32 %v1367, %v1442
    %v1458 = vadd.f32 %v1368, %v1443
    %v1459 = vadd.f32 %v1369, %v1444
    %v1460 = vadd.f32 %v1370, %v1445
    %s1461 = sld [smem:[#allocation6 + $0x31]]
    %v1462 = vstv %s1461
    %v1463 = vmul.f32 %v1462, %v1434
    %v1465 = vrot.slane %v1463, 1
    %v1466 = vrot.slane %v1463, 2
    %v1467 = vrot.slane %v1463, 3
    %v1468 = vrot.slane %v1463, 4
    %v1469 = vrot.slane %v1463, 5
    %v1470 = vrot.slane %v1463, 6
    %v1471 = vrot.slane %v1463, 7
    %v1479 = vadd.f32 %v1381, %v1463
    %v1480 = vadd.f32 %v1382, %v1465
    %v1481 = vadd.f32 %v1383, %v1466
    %v1482 = vadd.f32 %v1384, %v1467
    %v1483 = vadd.f32 %v1385, %v1468
    %v1484 = vadd.f32 %v1386, %v1469
    %v1485 = vadd.f32 %v1387, %v1470
    %v1486 = vadd.f32 %v1388, %v1471
    %s1487 = sld [smem:[#allocation6 + $0x37]]
    %v1488 = vstv %s1487
    %v1489 = vmul.f32 %v1488, %v1434
    %v1491 = vrot.slane %v1489, 1
    %v1492 = vrot.slane %v1489, 2
    %v1493 = vrot.slane %v1489, 3
    %v1494 = vrot.slane %v1489, 4
    %v1495 = vrot.slane %v1489, 5
    %v1496 = vrot.slane %v1489, 6
    %v1497 = vrot.slane %v1489, 7
    %v1505 = vadd.f32 %v1399, %v1489
    %v1506 = vadd.f32 %v1400, %v1491
    %v1507 = vadd.f32 %v1401, %v1492
    %v1508 = vadd.f32 %v1402, %v1493
    %v1509 = vadd.f32 %v1403, %v1494
    %v1510 = vadd.f32 %v1404, %v1495
    %v1511 = vadd.f32 %v1405, %v1496
    %v1512 = vadd.f32 %v1406, %v1497
    %1521 = vst [vmem:[#allocation1] ss:$9 sm:$0xff] %v1207
    %s1522 = scalar_lea.vmem [#allocation1], 1
    %1523 = vst [vmem:[%s1522] ss:$9 sm:$0xff] %v1208
    %s1524 = scalar_lea.vmem [#allocation1], 2
    %1525 = vst [vmem:[%s1524] ss:$9 sm:$0xff] %v1209
    %s1526 = scalar_lea.vmem [#allocation1], 3
    %1527 = vst [vmem:[%s1526] ss:$9 sm:$0xff] %v1210
    %s1528 = scalar_lea.vmem [#allocation1], 4
    %1529 = vst [vmem:[%s1528] ss:$9 sm:$0xff] %v1211
    %s1530 = scalar_lea.vmem [#allocation1], 5
    %1531 = vst [vmem:[%s1530] ss:$9 sm:$0xff] %v1212
    %s1532 = scalar_lea.vmem [#allocation1], 6
    %1533 = vst [vmem:[%s1532] ss:$9 sm:$0xff] %v1213
    %s1534 = scalar_lea.vmem [#allocation1], 7
    %1535 = vst [vmem:[%s1534] ss:$9 sm:$0xff] %v1214
    %v1536 = vld [vmem:[#allocation1] sm:$0xff]
    %1537 = vrot.lane.b32.xlu0 %v1536, 127
    %v1538 = vpop.permute.xlu0 %1537
    %v1540 = vsel %vm136, %v1538, 0.0
    %s1541 = sld [smem:[#allocation6 + $0x2d]]
    %v1542 = vstv %s1541
    %v1543 = vmul.f32 %v1542, %v1540
    %v1545 = vrot.slane %v1543, 1
    %v1546 = vrot.slane %v1543, 2
    %v1547 = vrot.slane %v1543, 3
    %v1548 = vrot.slane %v1543, 4
    %v1549 = vrot.slane %v1543, 5
    %v1550 = vrot.slane %v1543, 6
    %v1551 = vrot.slane %v1543, 7
    %v1559 = vadd.f32 %v1453, %v1543
    %v1560 = vadd.f32 %v1454, %v1545
    %v1561 = vadd.f32 %v1455, %v1546
    %v1562 = vadd.f32 %v1456, %v1547
    %v1563 = vadd.f32 %v1457, %v1548
    %v1564 = vadd.f32 %v1458, %v1549
    %v1565 = vadd.f32 %v1459, %v1550
    %v1566 = vadd.f32 %v1460, %v1551
    %s1567 = sld [smem:[#allocation6 + $0x33]]
    %v1568 = vstv %s1567
    %v1569 = vmul.f32 %v1568, %v1540
    %v1571 = vrot.slane %v1569, 1
    %v1572 = vrot.slane %v1569, 2
    %v1573 = vrot.slane %v1569, 3
    %v1574 = vrot.slane %v1569, 4
    %v1575 = vrot.slane %v1569, 5
    %v1576 = vrot.slane %v1569, 6
    %v1577 = vrot.slane %v1569, 7
    %v1585 = vadd.f32 %v1479, %v1569
    %v1586 = vadd.f32 %v1480, %v1571
    %v1587 = vadd.f32 %v1481, %v1572
    %v1588 = vadd.f32 %v1482, %v1573
    %v1589 = vadd.f32 %v1483, %v1574
    %v1590 = vadd.f32 %v1484, %v1575
    %v1591 = vadd.f32 %v1485, %v1576
    %v1592 = vadd.f32 %v1486, %v1577
    %s1593 = sld [smem:[#allocation6 + $0x39]]
    %v1594 = vstv %s1593
    %v1595 = vmul.f32 %v1594, %v1540
    %v1597 = vrot.slane %v1595, 1
    %v1598 = vrot.slane %v1595, 2
    %v1599 = vrot.slane %v1595, 3
    %v1600 = vrot.slane %v1595, 4
    %v1601 = vrot.slane %v1595, 5
    %v1602 = vrot.slane %v1595, 6
    %v1603 = vrot.slane %v1595, 7
    %v1611 = vadd.f32 %v1505, %v1595
    %v1612 = vadd.f32 %v1506, %v1597
    %v1613 = vadd.f32 %v1507, %v1598
    %v1614 = vadd.f32 %v1508, %v1599
    %v1615 = vadd.f32 %v1509, %v1600
    %v1616 = vadd.f32 %v1510, %v1601
    %v1617 = vadd.f32 %v1511, %v1602
    %v1618 = vadd.f32 %v1512, %v1603
    %1627 = vst [vmem:[#allocation1] ss:$9 sm:$0xff] %v1231
    %s1628 = scalar_lea.vmem [#allocation1], 1
    %1629 = vst [vmem:[%s1628] ss:$9 sm:$0xff] %v1232
    %s1630 = scalar_lea.vmem [#allocation1], 2
    %1631 = vst [vmem:[%s1630] ss:$9 sm:$0xff] %v1233
    %s1632 = scalar_lea.vmem [#allocation1], 3
    %1633 = vst [vmem:[%s1632] ss:$9 sm:$0xff] %v1234
    %s1634 = scalar_lea.vmem [#allocation1], 4
    %1635 = vst [vmem:[%s1634] ss:$9 sm:$0xff] %v1235
    %s1636 = scalar_lea.vmem [#allocation1], 5
    %1637 = vst [vmem:[%s1636] ss:$9 sm:$0xff] %v1236
    %s1638 = scalar_lea.vmem [#allocation1], 6
    %1639 = vst [vmem:[%s1638] ss:$9 sm:$0xff] %v1237
    %s1640 = scalar_lea.vmem [#allocation1], 7
    %1641 = vst [vmem:[%s1640] ss:$9 sm:$0xff] %v1238
    %v1642 = vld [vmem:[#allocation1] sm:$0xff]
    %1643 = vrot.lane.b32.xlu0 %v1642, 127
    %v1644 = vpop.permute.xlu0 %1643
    %v1646 = vsel %vm136, %v1644, 0.0
    %s1647 = sld [smem:[#allocation6 + $0x2f]]
    %v1648 = vstv %s1647
    %v1649 = vmul.f32 %v1648, %v1646
    %v1651 = vrot.slane %v1649, 1
    %v1652 = vrot.slane %v1649, 2
    %v1653 = vrot.slane %v1649, 3
    %v1654 = vrot.slane %v1649, 4
    %v1655 = vrot.slane %v1649, 5
    %v1656 = vrot.slane %v1649, 6
    %v1657 = vrot.slane %v1649, 7
    %v1665 = vadd.f32 %v1559, %v1649
    %v1666 = vadd.f32 %v1560, %v1651
    %v1667 = vadd.f32 %v1561, %v1652
    %v1668 = vadd.f32 %v1562, %v1653
    %v1669 = vadd.f32 %v1563, %v1654
    %v1670 = vadd.f32 %v1564, %v1655
    %v1671 = vadd.f32 %v1565, %v1656
    %v1672 = vadd.f32 %v1566, %v1657
    %s1673 = sld [smem:[#allocation6 + $0x35]]
    %v1674 = vstv %s1673
    %v1675 = vmul.f32 %v1674, %v1646
    %v1677 = vrot.slane %v1675, 1
    %v1678 = vrot.slane %v1675, 2
    %v1679 = vrot.slane %v1675, 3
    %v1680 = vrot.slane %v1675, 4
    %v1681 = vrot.slane %v1675, 5
    %v1682 = vrot.slane %v1675, 6
    %v1683 = vrot.slane %v1675, 7
    %v1691 = vadd.f32 %v1585, %v1675
    %v1692 = vadd.f32 %v1586, %v1677
    %v1693 = vadd.f32 %v1587, %v1678
    %v1694 = vadd.f32 %v1588, %v1679
    %v1695 = vadd.f32 %v1589, %v1680
    %v1696 = vadd.f32 %v1590, %v1681
    %v1697 = vadd.f32 %v1591, %v1682
    %v1698 = vadd.f32 %v1592, %v1683
    %s1699 = sld [smem:[#allocation6 + $0x3b]]
    %v1700 = vstv %s1699
    %v1701 = vmul.f32 %v1700, %v1646
    %v1703 = vrot.slane %v1701, 1
    %v1704 = vrot.slane %v1701, 2
    %v1705 = vrot.slane %v1701, 3
    %v1706 = vrot.slane %v1701, 4
    %v1707 = vrot.slane %v1701, 5
    %v1708 = vrot.slane %v1701, 6
    %v1709 = vrot.slane %v1701, 7
    %v1717 = vadd.f32 %v1611, %v1701
    %v1718 = vadd.f32 %v1612, %v1703
    %v1719 = vadd.f32 %v1613, %v1704
    %v1720 = vadd.f32 %v1614, %v1705
    %v1721 = vadd.f32 %v1615, %v1706
    %v1722 = vadd.f32 %v1616, %v1707
    %v1723 = vadd.f32 %v1617, %v1708
    %v1724 = vadd.f32 %v1618, %v1709
    %vm1725 = vcmp.ge.f32.partialorder %v1665, 0.0
    %vm1726 = vcmp.ge.f32.partialorder %v1666, 0.0
    %vm1727 = vcmp.ge.f32.partialorder %v1667, 0.0
    %vm1728 = vcmp.ge.f32.partialorder %v1668, 0.0
    %vm1729 = vcmp.ge.f32.partialorder %v1669, 0.0
    %vm1730 = vcmp.ge.f32.partialorder %v1670, 0.0
    %vm1731 = vcmp.ge.f32.partialorder %v1671, 0.0
    %vm1732 = vcmp.ge.f32.partialorder %v1672, 0.0
    %v1733 = vmul.f32 %v1665, 0.01
    %v1734 = vmul.f32 %v1666, 0.01
    %v1735 = vmul.f32 %v1667, 0.01
    %v1736 = vmul.f32 %v1668, 0.01
    %v1737 = vmul.f32 %v1669, 0.01
    %v1738 = vmul.f32 %v1670, 0.01
    %v1739 = vmul.f32 %v1671, 0.01
    %v1740 = vmul.f32 %v1672, 0.01
    %v1741 = vsel %vm1725, %v1665, %v1733
    %v1742 = vsel %vm1726, %v1666, %v1734
    %v1743 = vsel %vm1727, %v1667, %v1735
    %v1744 = vsel %vm1728, %v1668, %v1736
    %v1745 = vsel %vm1729, %v1669, %v1737
    %v1746 = vsel %vm1730, %v1670, %v1738
    %v1747 = vsel %vm1731, %v1671, %v1739
    %v1748 = vsel %vm1732, %v1672, %v1740
    %vm1749 = vcmp.ge.f32.partialorder %v1691, 0.0
    %vm1750 = vcmp.ge.f32.partialorder %v1692, 0.0
    %vm1751 = vcmp.ge.f32.partialorder %v1693, 0.0
    %vm1752 = vcmp.ge.f32.partialorder %v1694, 0.0
    %vm1753 = vcmp.ge.f32.partialorder %v1695, 0.0
    %vm1754 = vcmp.ge.f32.partialorder %v1696, 0.0
    %vm1755 = vcmp.ge.f32.partialorder %v1697, 0.0
    %vm1756 = vcmp.ge.f32.partialorder %v1698, 0.0
    %v1757 = vmul.f32 %v1691, 0.01
    %v1758 = vmul.f32 %v1692, 0.01
    %v1759 = vmul.f32 %v1693, 0.01
    %v1760 = vmul.f32 %v1694, 0.01
    %v1761 = vmul.f32 %v1695, 0.01
    %v1762 = vmul.f32 %v1696, 0.01
    %v1763 = vmul.f32 %v1697, 0.01
    %v1764 = vmul.f32 %v1698, 0.01
    %v1765 = vsel %vm1749, %v1691, %v1757
    %v1766 = vsel %vm1750, %v1692, %v1758
    %v1767 = vsel %vm1751, %v1693, %v1759
    %v1768 = vsel %vm1752, %v1694, %v1760
    %v1769 = vsel %vm1753, %v1695, %v1761
    %v1770 = vsel %vm1754, %v1696, %v1762
    %v1771 = vsel %vm1755, %v1697, %v1763
    %v1772 = vsel %vm1756, %v1698, %v1764
    %vm1773 = vcmp.ge.f32.partialorder %v1717, 0.0
    %vm1774 = vcmp.ge.f32.partialorder %v1718, 0.0
    %vm1775 = vcmp.ge.f32.partialorder %v1719, 0.0
    %vm1776 = vcmp.ge.f32.partialorder %v1720, 0.0
    %vm1777 = vcmp.ge.f32.partialorder %v1721, 0.0
    %vm1778 = vcmp.ge.f32.partialorder %v1722, 0.0
    %vm1779 = vcmp.ge.f32.partialorder %v1723, 0.0
    %vm1780 = vcmp.ge.f32.partialorder %v1724, 0.0
    %v1781 = vmul.f32 %v1717, 0.01
    %v1782 = vmul.f32 %v1718, 0.01
    %v1783 = vmul.f32 %v1719, 0.01
    %v1784 = vmul.f32 %v1720, 0.01
    %v1785 = vmul.f32 %v1721, 0.01
    %v1786 = vmul.f32 %v1722, 0.01
    %v1787 = vmul.f32 %v1723, 0.01
    %v1788 = vmul.f32 %v1724, 0.01
    %v1789 = vsel %vm1773, %v1717, %v1781
    %v1790 = vsel %vm1774, %v1718, %v1782
    %v1791 = vsel %vm1775, %v1719, %v1783
    %v1792 = vsel %vm1776, %v1720, %v1784
    %v1793 = vsel %vm1777, %v1721, %v1785
    %v1794 = vsel %vm1778, %v1722, %v1786
    %v1795 = vsel %vm1779, %v1723, %v1787
    %v1796 = vsel %vm1780, %v1724, %v1788
    %v1797 = vlaneseq
    %v1798 = vand.u32 %v1797, 127
    %vm1799 = vcmp.lt.s32.totalorder %v1798, 11
    %1808 = vst [vmem:[#allocation1] ss:$9 sm:$0xff] %v1741
    %s1809 = scalar_lea.vmem [#allocation1], 1
    %1810 = vst [vmem:[%s1809] ss:$9 sm:$0xff] %v1742
    %s1811 = scalar_lea.vmem [#allocation1], 2
    %1812 = vst [vmem:[%s1811] ss:$9 sm:$0xff] %v1743
    %s1813 = scalar_lea.vmem [#allocation1], 3
    %1814 = vst [vmem:[%s1813] ss:$9 sm:$0xff] %v1744
    %s1815 = scalar_lea.vmem [#allocation1], 4
    %1816 = vst [vmem:[%s1815] ss:$9 sm:$0xff] %v1745
    %s1817 = scalar_lea.vmem [#allocation1], 5
    %1818 = vst [vmem:[%s1817] ss:$9 sm:$0xff] %v1746
    %s1819 = scalar_lea.vmem [#allocation1], 6
    %1820 = vst [vmem:[%s1819] ss:$9 sm:$0xff] %v1747
    %s1821 = scalar_lea.vmem [#allocation1], 7
    %1822 = vst [vmem:[%s1821] ss:$9 sm:$0xff] %v1748
    %v1823 = vld [vmem:[#allocation1] sm:$0xff]
    %v1825 = vsel %vm1799, %v1823, 0.0
    %1834 = vst [vmem:[#allocation1] ss:$9 sm:$0xff] %v1765
    %s1835 = scalar_lea.vmem [#allocation1], 1
    %1836 = vst [vmem:[%s1835] ss:$9 sm:$0xff] %v1766
    %s1837 = scalar_lea.vmem [#allocation1], 2
    %1838 = vst [vmem:[%s1837] ss:$9 sm:$0xff] %v1767
    %s1839 = scalar_lea.vmem [#allocation1], 3
    %1840 = vst [vmem:[%s1839] ss:$9 sm:$0xff] %v1768
    %s1841 = scalar_lea.vmem [#allocation1], 4
    %1842 = vst [vmem:[%s1841] ss:$9 sm:$0xff] %v1769
    %s1843 = scalar_lea.vmem [#allocation1], 5
    %1844 = vst [vmem:[%s1843] ss:$9 sm:$0xff] %v1770
    %s1845 = scalar_lea.vmem [#allocation1], 6
    %1846 = vst [vmem:[%s1845] ss:$9 sm:$0xff] %v1771
    %s1847 = scalar_lea.vmem [#allocation1], 7
    %1848 = vst [vmem:[%s1847] ss:$9 sm:$0xff] %v1772
    %v1849 = vld [vmem:[#allocation1] sm:$0xff]
    %v1851 = vsel %vm1799, %v1849, 0.0
    %1860 = vst [vmem:[#allocation1] ss:$9 sm:$0xff] %v1789
    %s1861 = scalar_lea.vmem [#allocation1], 1
    %1862 = vst [vmem:[%s1861] ss:$9 sm:$0xff] %v1790
    %s1863 = scalar_lea.vmem [#allocation1], 2
    %1864 = vst [vmem:[%s1863] ss:$9 sm:$0xff] %v1791
    %s1865 = scalar_lea.vmem [#allocation1], 3
    %1866 = vst [vmem:[%s1865] ss:$9 sm:$0xff] %v1792
    %s1867 = scalar_lea.vmem [#allocation1], 4
    %1868 = vst [vmem:[%s1867] ss:$9 sm:$0xff] %v1793
    %s1869 = scalar_lea.vmem [#allocation1], 5
    %1870 = vst [vmem:[%s1869] ss:$9 sm:$0xff] %v1794
    %s1871 = scalar_lea.vmem [#allocation1], 6
    %1872 = vst [vmem:[%s1871] ss:$9 sm:$0xff] %v1795
    %s1873 = scalar_lea.vmem [#allocation1], 7
    %1874 = vst [vmem:[%s1873] ss:$9 sm:$0xff] %v1796
    %v1875 = vld [vmem:[#allocation1] sm:$0xff]
    %v1877 = vsel %vm1799, %v1875, 0.0
    %s1878 = sld [smem:[#allocation6 + $0x51]]
    %v1879 = vstv %s1878
    %s1880 = sld [smem:[#allocation6 + $0x52]]
    %v1881 = vstv %s1880
    %s1882 = sld [smem:[#allocation6 + $0x53]]
    %v1883 = vstv %s1882
    %s1884 = sld [smem:[#allocation6 + $0x3f]]
    %v1885 = vstv %s1884
    %v1886 = vmul.f32 %v1885, %v1825
    %v1887 = vadd.f32 %v1879, %v1886
    %s1888 = sld [smem:[#allocation6 + $0x41]]
    %v1889 = vstv %s1888
    %v1890 = vmul.f32 %v1889, %v1825
    %v1891 = vadd.f32 %v1881, %v1890
    %s1892 = sld [smem:[#allocation6 + $0x43]]
    %v1893 = vstv %s1892
    %v1894 = vmul.f32 %v1893, %v1825
    %v1895 = vadd.f32 %v1883, %v1894
    %s1896 = sld [smem:[#allocation6 + $0x45]]
    %v1897 = vstv %s1896
    %v1898 = vmul.f32 %v1897, %v1851
    %v1899 = vadd.f32 %v1887, %v1898
    %s1900 = sld [smem:[#allocation6 + $0x47]]
    %v1901 = vstv %s1900
    %v1902 = vmul.f32 %v1901, %v1851
    %v1903 = vadd.f32 %v1891, %v1902
    %s1904 = sld [smem:[#allocation6 + $0x49]]
    %v1905 = vstv %s1904
    %v1906 = vmul.f32 %v1905, %v1851
    %v1907 = vadd.f32 %v1895, %v1906
    %s1908 = sld [smem:[#allocation6 + $0x4b]]
    %v1909 = vstv %s1908
    %v1910 = vmul.f32 %v1909, %v1877
    %v1911 = vadd.f32 %v1899, %v1910
    %s1912 = sld [smem:[#allocation6 + $0x4d]]
    %v1913 = vstv %s1912
    %v1914 = vmul.f32 %v1913, %v1877
    %v1915 = vadd.f32 %v1903, %v1914
    %s1916 = sld [smem:[#allocation6 + $0x4f]]
    %v1917 = vstv %s1916
    %v1918 = vmul.f32 %v1917, %v1877
    %v1919 = vadd.f32 %v1907, %v1918
    %1921 = vrot.lane.b32.xlu0 %v1825, 1
    %v1922 = vpop.permute.xlu0 %1921
    %vm1924 = vcmask 7168
    %v1925 = vsel %vm1924, 0.0, %v1922
    %s1926 = sld [smem:[#allocation6 + $0x40]]
    %v1927 = vstv %s1926
    %v1928 = vmul.f32 %v1927, %v1925
    %v1929 = vadd.f32 %v1911, %v1928
    %s1930 = sld [smem:[#allocation6 + $0x42]]
    %v1931 = vstv %s1930
    %v1932 = vmul.f32 %v1931, %v1925
    %v1933 = vadd.f32 %v1915, %v1932
    %s1934 = sld [smem:[#allocation6 + $0x44]]
    %v1935 = vstv %s1934
    %v1936 = vmul.f32 %v1935, %v1925
    %v1937 = vadd.f32 %v1919, %v1936
    %1939 = vrot.lane.b32.xlu0 %v1851, 1
    %v1940 = vpop.permute.xlu0 %1939
    %v1942 = vsel %vm1924, 0.0, %v1940
    %s1943 = sld [smem:[#allocation6 + $0x46]]
    %v1944 = vstv %s1943
    %v1945 = vmul.f32 %v1944, %v1942
    %v1946 = vadd.f32 %v1929, %v1945
    %s1947 = sld [smem:[#allocation6 + $0x48]]
    %v1948 = vstv %s1947
    %v1949 = vmul.f32 %v1948, %v1942
    %v1950 = vadd.f32 %v1933, %v1949
    %s1951 = sld [smem:[#allocation6 + $0x4a]]
    %v1952 = vstv %s1951
    %v1953 = vmul.f32 %v1952, %v1942
    %v1954 = vadd.f32 %v1937, %v1953
    %1956 = vrot.lane.b32.xlu0 %v1877, 1
    %v1957 = vpop.permute.xlu0 %1956
    %v1959 = vsel %vm1924, 0.0, %v1957
    %s1960 = sld [smem:[#allocation6 + $0x4c]]
    %v1961 = vstv %s1960
    %v1962 = vmul.f32 %v1961, %v1959
    %v1963 = vadd.f32 %v1946, %v1962
    %s1964 = sld [smem:[#allocation6 + $0x4e]]
    %v1965 = vstv %s1964
    %v1966 = vmul.f32 %v1965, %v1959
    %v1967 = vadd.f32 %v1950, %v1966
    %s1968 = sld [smem:[#allocation6 + $0x50]]
    %v1969 = vstv %s1968
    %v1970 = vmul.f32 %v1969, %v1959
    %v1971 = vadd.f32 %v1954, %v1970
    %vm1972 = vcmp.ge.f32.partialorder %v1963, 0.0
    %v1973 = vmul.f32 %v1963, 0.01
    %v1974 = vsel %vm1972, %v1963, %v1973
    %vm1975 = vcmp.ge.f32.partialorder %v1967, 0.0
    %v1976 = vmul.f32 %v1967, 0.01
    %v1977 = vsel %vm1975, %v1967, %v1976
    %vm1978 = vcmp.ge.f32.partialorder %v1971, 0.0
    %v1979 = vmul.f32 %v1971, 0.01
    %v1980 = vsel %vm1978, %v1971, %v1979
    %vm1981 = vcmp.lt.s32.totalorder %v1798, 12
    %v1982 = vsel %vm1981, %v1974, 0.0
    %v1983 = vsel %vm1981, %v1977, 0.0
    %v1984 = vsel %vm1981, %v1980, 0.0
    %s1985 = sld [smem:[#allocation6 + $0x6f]]
    %v1986 = vstv %s1985
    %s1987 = sld [smem:[#allocation6 + $0x70]]
    %v1988 = vstv %s1987
    %s1989 = sld [smem:[#allocation6 + $0x71]]
    %v1990 = vstv %s1989
    %s1991 = sld [smem:[#allocation6 + $0x54]]
    %v1992 = vstv %s1991
    %v1993 = vmul.f32 %v1992, %v1982
    %v1994 = vadd.f32 %v1986, %v1993
    %s1995 = sld [smem:[#allocation6 + $0x57]]
    %v1996 = vstv %s1995
    %v1997 = vmul.f32 %v1996, %v1982
    %v1998 = vadd.f32 %v1988, %v1997
    %s1999 = sld [smem:[#allocation6 + $0x5a]]
    %v2000 = vstv %s1999
    %v2001 = vmul.f32 %v2000, %v1982
    %v2002 = vadd.f32 %v1990, %v2001
    %s2003 = sld [smem:[#allocation6 + $0x5d]]
    %v2004 = vstv %s2003
    %v2005 = vmul.f32 %v2004, %v1983
    %v2006 = vadd.f32 %v1994, %v2005
    %s2007 = sld [smem:[#allocation6 + $0x60]]
    %v2008 = vstv %s2007
    %v2009 = vmul.f32 %v2008, %v1983
    %v2010 = vadd.f32 %v1998, %v2009
    %s2011 = sld [smem:[#allocation6 + $0x63]]
    %v2012 = vstv %s2011
    %v2013 = vmul.f32 %v2012, %v1983
    %v2014 = vadd.f32 %v2002, %v2013
    %s2015 = sld [smem:[#allocation6 + $0x66]]
    %v2016 = vstv %s2015
    %v2017 = vmul.f32 %v2016, %v1984
    %v2018 = vadd.f32 %v2006, %v2017
    %s2019 = sld [smem:[#allocation6 + $0x69]]
    %v2020 = vstv %s2019
    %v2021 = vmul.f32 %v2020, %v1984
    %v2022 = vadd.f32 %v2010, %v2021
    %s2023 = sld [smem:[#allocation6 + $0x6c]]
    %v2024 = vstv %s2023
    %v2025 = vmul.f32 %v2024, %v1984
    %v2026 = vadd.f32 %v2014, %v2025
    %2028 = vrot.lane.b32.xlu0 %v1982, 1
    %v2029 = vpop.permute.xlu0 %2028
    %v2031 = vsel %vm1924, 0.0, %v2029
    %s2032 = sld [smem:[#allocation6 + $0x55]]
    %v2033 = vstv %s2032
    %v2034 = vmul.f32 %v2033, %v2031
    %v2035 = vadd.f32 %v2018, %v2034
    %s2036 = sld [smem:[#allocation6 + $0x58]]
    %v2037 = vstv %s2036
    %v2038 = vmul.f32 %v2037, %v2031
    %v2039 = vadd.f32 %v2022, %v2038
    %s2040 = sld [smem:[#allocation6 + $0x5b]]
    %v2041 = vstv %s2040
    %v2042 = vmul.f32 %v2041, %v2031
    %v2043 = vadd.f32 %v2026, %v2042
    %2045 = vrot.lane.b32.xlu0 %v1983, 1
    %v2046 = vpop.permute.xlu0 %2045
    %v2048 = vsel %vm1924, 0.0, %v2046
    %s2049 = sld [smem:[#allocation6 + $0x5e]]
    %v2050 = vstv %s2049
    %v2051 = vmul.f32 %v2050, %v2048
    %v2052 = vadd.f32 %v2035, %v2051
    %s2053 = sld [smem:[#allocation6 + $0x61]]
    %v2054 = vstv %s2053
    %v2055 = vmul.f32 %v2054, %v2048
    %v2056 = vadd.f32 %v2039, %v2055
    %s2057 = sld [smem:[#allocation6 + $0x64]]
    %v2058 = vstv %s2057
    %v2059 = vmul.f32 %v2058, %v2048
    %v2060 = vadd.f32 %v2043, %v2059
    %2062 = vrot.lane.b32.xlu0 %v1984, 1
    %v2063 = vpop.permute.xlu0 %2062
    %v2065 = vsel %vm1924, 0.0, %v2063
    %s2066 = sld [smem:[#allocation6 + $0x67]]
    %v2067 = vstv %s2066
    %v2068 = vmul.f32 %v2067, %v2065
    %v2069 = vadd.f32 %v2052, %v2068
    %s2070 = sld [smem:[#allocation6 + $0x6a]]
    %v2071 = vstv %s2070
    %v2072 = vmul.f32 %v2071, %v2065
    %v2073 = vadd.f32 %v2056, %v2072
    %s2074 = sld [smem:[#allocation6 + $0x6d]]
    %v2075 = vstv %s2074
    %v2076 = vmul.f32 %v2075, %v2065
    %v2077 = vadd.f32 %v2060, %v2076
    %2078 = vrot.lane.b32.xlu0 %v1982, 2
    %v2079 = vpop.permute.xlu0 %2078
    %vm2081 = vcmask 15360
    %v2082 = vsel %vm2081, 0.0, %v2079
    %s2083 = sld [smem:[#allocation6 + $0x56]]
    %v2084 = vstv %s2083
    %v2085 = vmul.f32 %v2084, %v2082
    %v2086 = vadd.f32 %v2069, %v2085
    %s2087 = sld [smem:[#allocation6 + $0x59]]
    %v2088 = vstv %s2087
    %v2089 = vmul.f32 %v2088, %v2082
    %v2090 = vadd.f32 %v2073, %v2089
    %s2091 = sld [smem:[#allocation6 + $0x5c]]
    %v2092 = vstv %s2091
    %v2093 = vmul.f32 %v2092, %v2082
    %v2094 = vadd.f32 %v2077, %v2093
    %2095 = vrot.lane.b32.xlu0 %v1983, 2
    %v2096 = vpop.permute.xlu0 %2095
    %v2098 = vsel %vm2081, 0.0, %v2096
    %s2099 = sld [smem:[#allocation6 + $0x5f]]
    %v2100 = vstv %s2099
    %v2101 = vmul.f32 %v2100, %v2098
    %v2102 = vadd.f32 %v2086, %v2101
    %s2103 = sld [smem:[#allocation6 + $0x62]]
    %v2104 = vstv %s2103
    %v2105 = vmul.f32 %v2104, %v2098
    %v2106 = vadd.f32 %v2090, %v2105
    %s2107 = sld [smem:[#allocation6 + $0x65]]
    %v2108 = vstv %s2107
    %v2109 = vmul.f32 %v2108, %v2098
    %v2110 = vadd.f32 %v2094, %v2109
    %2111 = vrot.lane.b32.xlu0 %v1984, 2
    %v2112 = vpop.permute.xlu0 %2111
    %v2114 = vsel %vm2081, 0.0, %v2112
    %s2115 = sld [smem:[#allocation6 + $0x68]]
    %v2116 = vstv %s2115
    %v2117 = vmul.f32 %v2116, %v2114
    %v2118 = vadd.f32 %v2102, %v2117
    %s2119 = sld [smem:[#allocation6 + $0x6b]]
    %v2120 = vstv %s2119
    %v2121 = vmul.f32 %v2120, %v2114
    %v2122 = vadd.f32 %v2106, %v2121
    %s2123 = sld [smem:[#allocation6 + $0x6e]]
    %v2124 = vstv %s2123
    %v2125 = vmul.f32 %v2124, %v2114
    %v2126 = vadd.f32 %v2110, %v2125
    %vm2127 = vcmp.ge.f32.partialorder %v2118, 0.0
    %v2128 = vmul.f32 %v2118, 0.01
    %v2129 = vsel %vm2127, %v2118, %v2128
    %vm2130 = vcmp.ge.f32.partialorder %v2122, 0.0
    %v2131 = vmul.f32 %v2122, 0.01
    %v2132 = vsel %vm2130, %v2122, %v2131
    %vm2133 = vcmp.ge.f32.partialorder %v2126, 0.0
    %v2134 = vmul.f32 %v2126, 0.01
    %v2135 = vsel %vm2133, %v2126, %v2134
    %vm2136 = vcmp.lt.s32.totalorder %v1798, 14
    %v2137 = vsel %vm2136, %v2129, 0.0
    %v2138 = vsel %vm2136, %v2132, 0.0
    %v2139 = vsel %vm2136, %v2135, 0.0
    %s2140 = sld [smem:[#allocation6 + $0x7b]]
    %v2141 = vstv %s2140
    %s2142 = sld [smem:[#allocation6 + $0x72]]
    %v2143 = vstv %s2142
    %v2144 = vmul.f32 %v2143, %v2137
    %v2145 = vadd.f32 %v2141, %v2144
    %s2146 = sld [smem:[#allocation6 + $0x75]]
    %v2147 = vstv %s2146
    %v2148 = vmul.f32 %v2147, %v2138
    %v2149 = vadd.f32 %v2145, %v2148
    %s2150 = sld [smem:[#allocation6 + $0x78]]
    %v2151 = vstv %s2150
    %v2152 = vmul.f32 %v2151, %v2139
    %v2153 = vadd.f32 %v2149, %v2152
    %2155 = vrot.lane.b32.xlu0 %v2137, 1
    %v2156 = vpop.permute.xlu0 %2155
    %v2158 = vsel %vm1924, 0.0, %v2156
    %s2159 = sld [smem:[#allocation6 + $0x73]]
    %v2160 = vstv %s2159
    %v2161 = vmul.f32 %v2160, %v2158
    %v2162 = vadd.f32 %v2153, %v2161
    %2164 = vrot.lane.b32.xlu0 %v2138, 1
    %v2165 = vpop.permute.xlu0 %2164
    %v2167 = vsel %vm1924, 0.0, %v2165
    %s2168 = sld [smem:[#allocation6 + $0x76]]
    %v2169 = vstv %s2168
    %v2170 = vmul.f32 %v2169, %v2167
    %v2171 = vadd.f32 %v2162, %v2170
    %2173 = vrot.lane.b32.xlu0 %v2139, 1
    %v2174 = vpop.permute.xlu0 %2173
    %v2176 = vsel %vm1924, 0.0, %v2174
    %s2177 = sld [smem:[#allocation6 + $0x79]]
    %v2178 = vstv %s2177
    %v2179 = vmul.f32 %v2178, %v2176
    %v2180 = vadd.f32 %v2171, %v2179
    %2181 = vrot.lane.b32.xlu0 %v2137, 2
    %v2182 = vpop.permute.xlu0 %2181
    %v2184 = vsel %vm2081, 0.0, %v2182
    %s2185 = sld [smem:[#allocation6 + $0x74]]
    %v2186 = vstv %s2185
    %v2187 = vmul.f32 %v2186, %v2184
    %v2188 = vadd.f32 %v2180, %v2187
    %2189 = vrot.lane.b32.xlu0 %v2138, 2
    %v2190 = vpop.permute.xlu0 %2189
    %v2192 = vsel %vm2081, 0.0, %v2190
    %s2193 = sld [smem:[#allocation6 + $0x77]]
    %v2194 = vstv %s2193
    %v2195 = vmul.f32 %v2194, %v2192
    %v2196 = vadd.f32 %v2188, %v2195
    %2197 = vrot.lane.b32.xlu0 %v2139, 2
    %v2198 = vpop.permute.xlu0 %2197
    %v2200 = vsel %vm2081, 0.0, %v2198
    %s2201 = sld [smem:[#allocation6 + $0x7a]]
    %v2202 = vstv %s2201
    %v2203 = vmul.f32 %v2202, %v2200
    %v2204 = vadd.f32 %v2196, %v2203
    %vm2205 = vcmp.ge.f32.partialorder %v2204, 0.0
    %v2206 = vmul.f32 %v2204, 0.01
    %v2207 = vsel %vm2205, %v2204, %v2206
    %v2209 = vrot.slane %v2207, 1
    %v2210 = vrot.slane %v2207, 2
    %v2211 = vrot.slane %v2207, 3
    %v2212 = vrot.slane %v2207, 4
    %v2213 = vrot.slane %v2207, 5
    %v2214 = vrot.slane %v2207, 6
    %v2215 = vrot.slane %v2207, 7
    %2223 = vst [vmem:[#allocation7] sm:$0x1] %v2207
    %2224 = vst [vmem:[#allocation7 + $0x1] sm:$0x1] %v2209
    %2225 = vst [vmem:[#allocation7 + $0x2] sm:$0x1] %v2210
    %2226 = vst [vmem:[#allocation7 + $0x3] sm:$0x1] %v2211
    %2227 = vst [vmem:[#allocation7 + $0x4] sm:$0x1] %v2212
    %2228 = vst [vmem:[#allocation7 + $0x5] sm:$0x1] %v2213
    %2229 = vst [vmem:[#allocation7 + $0x6] sm:$0x1] %v2214
    %2230 = vst [vmem:[#allocation7 + $0x7] sm:$0x1] %v2215
    // Predicated region
    $region18: #{tpu_custom_call.1} parent=1 // pred_check
      _
    $region19: #{tpu_custom_call.1} parent=1 // pred_check_branch
      %2232 = sbr.rel (0) target = $region21
    $region20: #{tpu_custom_call.1} parent=1 // pred_region
      %2234 = vsyncadd [#allocation4], 0
      %s2235 = sshll.u32 [#allocation7], 4
      %s2236 = int_to_ptr.vmem [resolvable:$true] %s2235
      %s2237 = sshll.u32 %s2, 4
      %s2238 = int_to_ptr.hbm [resolvable:$true] %s2237
      %2243 = dma.vmem_to_hbm [thread:$0]  %s2236, 128, %s2238, [#allocation4], 16, 16, 1
    $region21: #{tpu_custom_call.1} parent=1 // pred_fallthru
      _
    // Predicated region
    $region22: #{tpu_custom_call.1} parent=1 // pred_check
      _
    $region23: #{tpu_custom_call.1} parent=1 // pred_check_branch
      %2245 = sbr.rel (0) target = $region25
    $region24: #{tpu_custom_call.1} parent=1 // pred_region
      %2247 = dma.done [#allocation4], 128
    $region25: #{tpu_custom_call.1} parent=1 // pred_fallthru
      _
    %2248 = vsyncpa [#allocation3], 1
    %2249 = vsyncpa [#allocation4], 1
    %2250 = vsyncpa [#allocation5], 1

</llo_original>
